<compile_context>
chip_gen: v5e
topology: v5e:2x2
jax: 0.10.0
libtpu: 0.0.40
codegen_flags: <defaults>
</compile_context>

<pallas_src>
import jax
import jax.numpy as jnp
from jax.experimental import pallas as pl
from jax.experimental.pallas import tpu as pltpu


# ----------------------------- helpers ---------------------------------------

def _round_up(x, m):
    return ((x + m - 1) // m) * m


def _cdiv(a, b):
    return -(-a // b)


def _vmem_estimate(tb, d, dt, di, itemsize):
    """Rough per-call VMEM footprint: double-buffered batch tiles (4 inputs,
    5 outputs) + single-buffered weights/bias rows."""
    tiles_in = 2 * tb * (di + dt + 2 * d) * itemsize
    tiles_out = 2 * 5 * tb * d * itemsize
    weights = (di * d + dt * d + 3 * d * d + 8 * d) * itemsize
    return tiles_in + tiles_out + weights


def _choose_tb(b, d, dt, di, itemsize):
    # Sublane packing: 8 rows for f32, 16 for bf16, 32 for int8.
    sub = max(8, 32 // itemsize)
    # Aim for >= 2 grid steps so ("parallel",) can use both v7x TensorCores.
    tb = min(512, _round_up(_cdiv(b, 2), sub))
    # Shrink the tile if the per-step VMEM footprint would be too large
    # (keeps well inside v7x's 64 MiB per-TC VMEM).
    while tb > sub and _vmem_estimate(tb, d, dt, di, itemsize) > 40 * 1024 * 1024:
        tb = max(sub, _round_up(tb // 2, sub))
    return tb


def _pad_rows(x, rows):
    r = x.shape[0]
    if r == rows:
        return x
    return jnp.pad(x, ((0, rows - r), (0, 0)))


def _row(v):
    return v.reshape(1, -1)


# ------------------------ fused forward kernel --------------------------------

def _fused_kernel(img_e_ref, txt_e_ref, it1_ref, it2_ref,
                  img_w_ref, img_b_ref, txt_w_ref, txt_b_ref,
                  w1_ii_ref, b1_ii_ref, w2_ii_ref,
                  w1_ti_ref, b1_ti_ref, w2_ti_ref,
                  w1_fi_ref, b1_fi_ref, w2_fi_ref,
                  image_o, text_o, isi_o, ist_o, fused_o):
    f32 = jnp.float32

    # --- Linear projections into item space (one MXU pass each, f32 acc) -----
    image = (jnp.dot(img_e_ref[...], img_w_ref[...], preferred_element_type=f32)
             + img_b_ref[...].astype(f32))                     # (TB, D) f32
    text = (jnp.dot(txt_e_ref[...], txt_w_ref[...], preferred_element_type=f32)
            + txt_b_ref[...].astype(f32))                      # (TB, D) f32
    image_o[...] = image.astype(image_o.dtype)
    text_o[...] = text.astype(text_o.dtype)

    # --- EmbeddingTwoSemantic: two dots vs. the same resident W1, score as
    #     VPU multiply + lane reduce, 2-way softmax folded into a sigmoid. ----
    def emb2sem(x1, x2, w1_ref, b1_ref, w2_ref):
        w1 = w1_ref[...]
        b1 = b1_ref[...].astype(f32)
        w2 = w2_ref[...].astype(f32)
        h1 = jnp.tanh(jnp.dot(x1.astype(w1.dtype), w1,
                              preferred_element_type=f32) + b1)
        h2 = jnp.tanh(jnp.dot(x2.astype(w1.dtype), w1,
                              preferred_element_type=f32) + b1)
        s1 = jnp.sum(h1 * w2, axis=-1, keepdims=True)          # (TB, 1)
        s2 = jnp.sum(h2 * w2, axis=-1, keepdims=True)          # (TB, 1)
        # softmax([s1, s2]) == [g, 1-g] with g = sigmoid(s1 - s2) (exact, stable)
        g = jax.nn.sigmoid(s1 - s2)                            # (TB, 1) f32
        return x2 + g * (x1 - x2)                              # (TB, D) f32

    it1 = it1_ref[...].astype(f32)
    it2 = it2_ref[...].astype(f32)

    isi = emb2sem(image, it2, w1_ii_ref, b1_ii_ref, w2_ii_ref)
    ist = emb2sem(text, it1, w1_ti_ref, b1_ti_ref, w2_ti_ref)
    fused = emb2sem(isi, ist, w1_fi_ref, b1_fi_ref, w2_fi_ref)

    isi_o[...] = isi.astype(isi_o.dtype)
    ist_o[...] = ist.astype(ist_o.dtype)
    fused_o[...] = fused.astype(fused_o.dtype)


# ----------------------------- model forward ---------------------------------

def id_fusion_forward(item1, item2, text_emb, image_emb, params):
    """IdFusionModel.forward.

    item1, item2: [B, D]; text_emb: [B, Dt]; image_emb: [B, Di].
    params:
      'text2item_w' [Dt, D], 'text2item_b' [D]
      'image2item_w' [Di, D], 'image2item_b' [D]
      'text_item' / 'image_item' / 'fusion_item': (W1 [D, D], b1 [D], w2 [D])
    """
    B, D = item1.shape
    Dt = text_emb.shape[1]
    Di = image_emb.shape[1]
    dtype = item1.dtype
    itemsize = jnp.dtype(dtype).itemsize

    tb = _choose_tb(B, D, Dt, Di, itemsize)
    bpad = _round_up(B, tb)
    grid = (bpad // tb,)

    img_e = _pad_rows(image_emb, bpad)
    txt_e = _pad_rows(text_emb, bpad)
    it1_p = _pad_rows(item1, bpad)
    it2_p = _pad_rows(item2, bpad)

    w1_ii, b1_ii, w2_ii = params["image_item"]
    w1_ti, b1_ti, w2_ti = params["text_item"]
    w1_fi, b1_fi, w2_fi = params["fusion_item"]

    # Batch-tiled blocks (last dim == full array dim -> legal; no D padding).
    def tile(cols):
        return pl.BlockSpec((tb, cols), lambda i: (i, 0))

    # Weight / bias-row blocks never change across the grid: single-buffer them.
    def const(shape):
        return pl.BlockSpec(shape, lambda i: (0, 0),
                            pipeline_mode=pl.Buffered(1))

    in_specs = [
        tile(Di), tile(Dt), tile(D), tile(D),
        const((Di, D)), const((1, D)),
        const((Dt, D)), const((1, D)),
        const((D, D)), const((1, D)), const((1, D)),
        const((D, D)), const((1, D)), const((1, D)),
        const((D, D)), const((1, D)), const((1, D)),
    ]
    out_specs = [tile(D)] * 5
    out_shape = tuple(jax.ShapeDtypeStruct((bpad, D), dtype) for _ in range(5))

    flops = 2 * bpad * D * (Di + Dt + 6 * D) + 24 * bpad * D
    transcendentals = 6 * bpad * D + 3 * bpad
    bytes_accessed = itemsize * (bpad * (Di + Dt + 2 * D)
                                 + (Di + Dt + 3 * D + 8) * D
                                 + 5 * bpad * D)

    vmem_limit = int(min(48 * 1024 * 1024,
                         max(8 * 1024 * 1024,
                             2 * _vmem_estimate(tb, D, Dt, Di, itemsize))))

    fused_call = pl.pallas_call(
        _fused_kernel,
        out_shape=out_shape,
        grid_spec=pltpu.PrefetchScalarGridSpec(
            num_scalar_prefetch=0,
            grid=grid,
            in_specs=in_specs,
            out_specs=out_specs,
        ),
        compiler_params=pltpu.CompilerParams(
            dimension_semantics=("parallel",),
            vmem_limit_bytes=vmem_limit,
        ),
        cost_estimate=pl.CostEstimate(
            flops=flops,
            transcendentals=transcendentals,
            bytes_accessed=bytes_accessed),
    )

    image_p, text_p, isi_p, ist_p, fused_p = fused_call(
        img_e, txt_e, it1_p, it2_p,
        params["image2item_w"], _row(params["image2item_b"]),
        params["text2item_w"], _row(params["text2item_b"]),
        w1_ii, _row(b1_ii), _row(w2_ii),
        w1_ti, _row(b1_ti), _row(w2_ti),
        w1_fi, _row(b1_fi), _row(w2_fi),
    )

    crop = (lambda a: a) if bpad == B else (lambda a: a[:B])
    return (crop(image_p), item2, crop(text_p), item1,
            crop(isi_p), crop(ist_p), crop(fused_p))


# ------------------------------- reference -----------------------------------

def _ref_emb2sem(x1, x2, p):
    w1, b1, w2 = p

    def q(x):
        return jnp.tanh(x @ w1 + b1) @ w2.reshape(-1, 1)

    att = jnp.concatenate([q(x1), q(x2)], axis=-1)
    w = jax.nn.softmax(att, axis=-1)
    return w[:, 0:1] * x1 + w[:, 1:2] * x2


def _ref_forward(item1, item2, text_emb, image_emb, params):
    image = image_emb @ params["image2item_w"] + params["image2item_b"]
    text = text_emb @ params["text2item_w"] + params["text2item_b"]
    isi = _ref_emb2sem(image, item2, params["image_item"])
    ist = _ref_emb2sem(text, item1, params["text_item"])
    fused = _ref_emb2sem(isi, ist, params["fusion_item"])
    return image, item2, text, item1, isi, ist, fused


# --------------------------------- test --------------------------------------

if __name__ == "__main__":
    B, D, DT, DI = 16, 32, 48, 24     # items, item dim, text dim, image dim

    key = jax.random.PRNGKey(0)
    keys = jax.random.split(key, 18)

    item1 = jax.random.normal(keys[0], (B, D), jnp.float32)
    item2 = jax.random.normal(keys[1], (B, D), jnp.float32)
    text_emb = jax.random.normal(keys[2], (B, DT), jnp.float32)
    image_emb = jax.random.normal(keys[3], (B, DI), jnp.float32)

    def uni(k, shape, fan_in):
        bound = 1.0 / jnp.sqrt(fan_in)
        return jax.random.uniform(k, shape, jnp.float32, -bound, bound)

    params = {
        "text2item_w": uni(keys[4], (DT, D), DT),
        "text2item_b": uni(keys[5], (D,), DT),
        "image2item_w": uni(keys[6], (DI, D), DI),
        "image2item_b": uni(keys[7], (D,), DI),
        "text_item": (uni(keys[8], (D, D), D), uni(keys[9], (D,), D),
                      uni(keys[10], (D,), D)),
        "image_item": (uni(keys[11], (D, D), D), uni(keys[12], (D,), D),
                       uni(keys[13], (D,), D)),
        "fusion_item": (uni(keys[14], (D, D), D), uni(keys[15], (D,), D),
                        uni(keys[16], (D,), D)),
    }

    outs = id_fusion_forward(item1, item2, text_emb, image_emb, params)
    outs = jax.block_until_ready(outs)

    refs = _ref_forward(item1, item2, text_emb, image_emb, params)

    names = ("image", "item2", "text", "item1",
             "item_specific_image", "item_specific_text", "item_fusion_embedding")
    for name, o, r in zip(names, outs, refs):
        assert o.shape == r.shape, f"{name}: shape {o.shape} vs {r.shape}"
        assert jnp.allclose(o, r, atol=1e-4, rtol=1e-4), f"mismatch in {name}"

    print("KERNEL_OK")
</pallas_src>

<mosaic_0001>
module attributes {stable_mosaic.version = 11 : i64} {
  func.func @_fused_kernel(%arg0: i32, %arg1: memref<8x24xf32, #tpu.memory_space<vmem>>, %arg2: memref<8x48xf32, #tpu.memory_space<vmem>>, %arg3: memref<8x32xf32, #tpu.memory_space<vmem>>, %arg4: memref<8x32xf32, #tpu.memory_space<vmem>>, %arg5: memref<24x32xf32, #tpu.memory_space<vmem>>, %arg6: memref<1x32xf32, #tpu.memory_space<vmem>>, %arg7: memref<48x32xf32, #tpu.memory_space<vmem>>, %arg8: memref<1x32xf32, #tpu.memory_space<vmem>>, %arg9: memref<32x32xf32, #tpu.memory_space<vmem>>, %arg10: memref<1x32xf32, #tpu.memory_space<vmem>>, %arg11: memref<1x32xf32, #tpu.memory_space<vmem>>, %arg12: memref<32x32xf32, #tpu.memory_space<vmem>>, %arg13: memref<1x32xf32, #tpu.memory_space<vmem>>, %arg14: memref<1x32xf32, #tpu.memory_space<vmem>>, %arg15: memref<32x32xf32, #tpu.memory_space<vmem>>, %arg16: memref<1x32xf32, #tpu.memory_space<vmem>>, %arg17: memref<1x32xf32, #tpu.memory_space<vmem>>, %arg18: memref<8x32xf32, #tpu.memory_space<vmem>>, %arg19: memref<8x32xf32, #tpu.memory_space<vmem>>, %arg20: memref<8x32xf32, #tpu.memory_space<vmem>>, %arg21: memref<8x32xf32, #tpu.memory_space<vmem>>, %arg22: memref<8x32xf32, #tpu.memory_space<vmem>>) attributes {dimension_semantics = [#tpu.dimension_semantics<parallel>], iteration_bounds = array<i64: 2>, scalar_prefetch = 0 : i64, scratch_operands = 0 : i64, tpu.core_type = #tpu.core_type<tc>, window_params = [{transform_indices = @transform_0, window_bounds = array<i64: 8, 24>}, {transform_indices = @transform_1, window_bounds = array<i64: 8, 48>}, {transform_indices = @transform_2, window_bounds = array<i64: 8, 32>}, {transform_indices = @transform_3, window_bounds = array<i64: 8, 32>}, {pipeline_mode = #tpu.pipeline_mode<synchronous>, transform_indices = @transform_4, window_bounds = array<i64: 24, 32>}, {pipeline_mode = #tpu.pipeline_mode<synchronous>, transform_indices = @transform_5, window_bounds = array<i64: 1, 32>}, {pipeline_mode = #tpu.pipeline_mode<synchronous>, transform_indices = @transform_6, window_bounds = array<i64: 48, 32>}, {pipeline_mode = #tpu.pipeline_mode<synchronous>, transform_indices = @transform_7, window_bounds = array<i64: 1, 32>}, {pipeline_mode = #tpu.pipeline_mode<synchronous>, transform_indices = @transform_8, window_bounds = array<i64: 32, 32>}, {pipeline_mode = #tpu.pipeline_mode<synchronous>, transform_indices = @transform_9, window_bounds = array<i64: 1, 32>}, {pipeline_mode = #tpu.pipeline_mode<synchronous>, transform_indices = @transform_10, window_bounds = array<i64: 1, 32>}, {pipeline_mode = #tpu.pipeline_mode<synchronous>, transform_indices = @transform_11, window_bounds = array<i64: 32, 32>}, {pipeline_mode = #tpu.pipeline_mode<synchronous>, transform_indices = @transform_12, window_bounds = array<i64: 1, 32>}, {pipeline_mode = #tpu.pipeline_mode<synchronous>, transform_indices = @transform_13, window_bounds = array<i64: 1, 32>}, {pipeline_mode = #tpu.pipeline_mode<synchronous>, transform_indices = @transform_14, window_bounds = array<i64: 32, 32>}, {pipeline_mode = #tpu.pipeline_mode<synchronous>, transform_indices = @transform_15, window_bounds = array<i64: 1, 32>}, {pipeline_mode = #tpu.pipeline_mode<synchronous>, transform_indices = @transform_16, window_bounds = array<i64: 1, 32>}, {transform_indices = @transform_17, window_bounds = array<i64: 8, 32>}, {transform_indices = @transform_18, window_bounds = array<i64: 8, 32>}, {transform_indices = @transform_19, window_bounds = array<i64: 8, 32>}, {transform_indices = @transform_20, window_bounds = array<i64: 8, 32>}, {transform_indices = @transform_21, window_bounds = array<i64: 8, 32>}]} {
    %c0 = arith.constant 0 : index
    %c0_0 = arith.constant 0 : index
    %0 = vector.load %arg1[%c0, %c0_0] : memref<8x24xf32, #tpu.memory_space<vmem>>, vector<8x24xf32>
    %c0_1 = arith.constant 0 : index
    %c0_2 = arith.constant 0 : index
    %1 = vector.load %arg5[%c0_1, %c0_2] : memref<24x32xf32, #tpu.memory_space<vmem>>, vector<24x32xf32>
    %cst = arith.constant dense<0.000000e+00> : vector<8x32xf32>
    %2 = tpu.matmul %0, %1, %cst {dimension_numbers = #tpu.dot_dimension_numbers<[1], [0], [0], [1], [0, 0, 1, 1], [], []>} : vector<8x24xf32>, vector<24x32xf32>, vector<8x32xf32> -> vector<8x32xf32>
    %c0_3 = arith.constant 0 : index
    %c0_4 = arith.constant 0 : index
    %3 = vector.load %arg6[%c0_3, %c0_4] : memref<1x32xf32, #tpu.memory_space<vmem>>, vector<1x32xf32>
    %4 = vector.broadcast %3 : vector<1x32xf32> to vector<8x32xf32>
    %5 = arith.addf %2, %4 : vector<8x32xf32>
    %c0_5 = arith.constant 0 : index
    %c0_6 = arith.constant 0 : index
    %6 = vector.load %arg2[%c0_5, %c0_6] : memref<8x48xf32, #tpu.memory_space<vmem>>, vector<8x48xf32>
    %c0_7 = arith.constant 0 : index
    %c0_8 = arith.constant 0 : index
    %7 = vector.load %arg7[%c0_7, %c0_8] : memref<48x32xf32, #tpu.memory_space<vmem>>, vector<48x32xf32>
    %cst_9 = arith.constant dense<0.000000e+00> : vector<8x32xf32>
    %8 = tpu.matmul %6, %7, %cst_9 {dimension_numbers = #tpu.dot_dimension_numbers<[1], [0], [0], [1], [0, 0, 1, 1], [], []>} : vector<8x48xf32>, vector<48x32xf32>, vector<8x32xf32> -> vector<8x32xf32>
    %c0_10 = arith.constant 0 : index
    %c0_11 = arith.constant 0 : index
    %9 = vector.load %arg8[%c0_10, %c0_11] : memref<1x32xf32, #tpu.memory_space<vmem>>, vector<1x32xf32>
    %10 = vector.broadcast %9 : vector<1x32xf32> to vector<8x32xf32>
    %11 = arith.addf %8, %10 : vector<8x32xf32>
    %c0_12 = arith.constant 0 : index
    %c0_13 = arith.constant 0 : index
    %12 = vector.load %arg18[%c0_12, %c0_13] : memref<8x32xf32, #tpu.memory_space<vmem>>, vector<8x32xf32>
    tpu.vector_store %arg18[%c0_12, %c0_13], %5 {strides = array<i32>} : memref<8x32xf32, #tpu.memory_space<vmem>>, vector<8x32xf32>,
    %c0_14 = arith.constant 0 : index
    %c0_15 = arith.constant 0 : index
    %13 = vector.load %arg19[%c0_14, %c0_15] : memref<8x32xf32, #tpu.memory_space<vmem>>, vector<8x32xf32>
    tpu.vector_store %arg19[%c0_14, %c0_15], %11 {strides = array<i32>} : memref<8x32xf32, #tpu.memory_space<vmem>>, vector<8x32xf32>,
    %c0_16 = arith.constant 0 : index
    %c0_17 = arith.constant 0 : index
    %14 = vector.load %arg3[%c0_16, %c0_17] : memref<8x32xf32, #tpu.memory_space<vmem>>, vector<8x32xf32>
    %c0_18 = arith.constant 0 : index
    %c0_19 = arith.constant 0 : index
    %15 = vector.load %arg4[%c0_18, %c0_19] : memref<8x32xf32, #tpu.memory_space<vmem>>, vector<8x32xf32>
    %c0_20 = arith.constant 0 : index
    %c0_21 = arith.constant 0 : index
    %16 = vector.load %arg9[%c0_20, %c0_21] : memref<32x32xf32, #tpu.memory_space<vmem>>, vector<32x32xf32>
    %c0_22 = arith.constant 0 : index
    %c0_23 = arith.constant 0 : index
    %17 = vector.load %arg10[%c0_22, %c0_23] : memref<1x32xf32, #tpu.memory_space<vmem>>, vector<1x32xf32>
    %c0_24 = arith.constant 0 : index
    %c0_25 = arith.constant 0 : index
    %18 = vector.load %arg11[%c0_24, %c0_25] : memref<1x32xf32, #tpu.memory_space<vmem>>, vector<1x32xf32>
    %cst_26 = arith.constant dense<0.000000e+00> : vector<8x32xf32>
    %19 = tpu.matmul %5, %16, %cst_26 {dimension_numbers = #tpu.dot_dimension_numbers<[1], [0], [0], [1], [0, 0, 1, 1], [], []>} : vector<8x32xf32>, vector<32x32xf32>, vector<8x32xf32> -> vector<8x32xf32>
    %20 = vector.broadcast %17 : vector<1x32xf32> to vector<8x32xf32>
    %21 = arith.addf %19, %20 : vector<8x32xf32>
    %22 = math.tanh %21 : vector<8x32xf32>
    %cst_27 = arith.constant dense<0.000000e+00> : vector<8x32xf32>
    %23 = tpu.matmul %15, %16, %cst_27 {dimension_numbers = #tpu.dot_dimension_numbers<[1], [0], [0], [1], [0, 0, 1, 1], [], []>} : vector<8x32xf32>, vector<32x32xf32>, vector<8x32xf32> -> vector<8x32xf32>
    %24 = vector.broadcast %17 : vector<1x32xf32> to vector<8x32xf32>
    %25 = arith.addf %23, %24 : vector<8x32xf32>
    %26 = math.tanh %25 : vector<8x32xf32>
    %27 = vector.broadcast %18 : vector<1x32xf32> to vector<8x32xf32>
    %28 = arith.mulf %22, %27 : vector<8x32xf32>
    %cst_28 = arith.constant dense<0.000000e+00> : vector<8xf32>
    %29 = vector.multi_reduction <add>, %28, %cst_28 [1] : vector<8x32xf32> to vector<8xf32>
    %30 = vector.shape_cast %29 : vector<8xf32> to vector<8x1xf32>
    %31 = vector.broadcast %18 : vector<1x32xf32> to vector<8x32xf32>
    %32 = arith.mulf %26, %31 : vector<8x32xf32>
    %cst_29 = arith.constant dense<0.000000e+00> : vector<8xf32>
    %33 = vector.multi_reduction <add>, %32, %cst_29 [1] : vector<8x32xf32> to vector<8xf32>
    %34 = vector.shape_cast %33 : vector<8xf32> to vector<8x1xf32>
    %35 = arith.subf %30, %34 : vector<8x1xf32>
    %36 = arith.negf %35 : vector<8x1xf32>
    %37 = math.exp %36 : vector<8x1xf32>
    %cst_30 = arith.constant 1.000000e+00 : f32
    %38 = vector.broadcast %cst_30 : f32 to vector<8x1xf32>
    %39 = arith.addf %38, %37 : vector<8x1xf32>
    %40 = arith.divf %38, %39 : vector<8x1xf32>
    %41 = arith.subf %5, %15 : vector<8x32xf32>
    %42 = vector.broadcast %40 : vector<8x1xf32> to vector<8x32xf32>
    %43 = arith.mulf %42, %41 : vector<8x32xf32>
    %44 = arith.addf %15, %43 : vector<8x32xf32>
    %c0_31 = arith.constant 0 : index
    %c0_32 = arith.constant 0 : index
    %45 = vector.load %arg12[%c0_31, %c0_32] : memref<32x32xf32, #tpu.memory_space<vmem>>, vector<32x32xf32>
    %c0_33 = arith.constant 0 : index
    %c0_34 = arith.constant 0 : index
    %46 = vector.load %arg13[%c0_33, %c0_34] : memref<1x32xf32, #tpu.memory_space<vmem>>, vector<1x32xf32>
    %c0_35 = arith.constant 0 : index
    %c0_36 = arith.constant 0 : index
    %47 = vector.load %arg14[%c0_35, %c0_36] : memref<1x32xf32, #tpu.memory_space<vmem>>, vector<1x32xf32>
    %cst_37 = arith.constant dense<0.000000e+00> : vector<8x32xf32>
    %48 = tpu.matmul %11, %45, %cst_37 {dimension_numbers = #tpu.dot_dimension_numbers<[1], [0], [0], [1], [0, 0, 1, 1], [], []>} : vector<8x32xf32>, vector<32x32xf32>, vector<8x32xf32> -> vector<8x32xf32>
    %49 = vector.broadcast %46 : vector<1x32xf32> to vector<8x32xf32>
    %50 = arith.addf %48, %49 : vector<8x32xf32>
    %51 = math.tanh %50 : vector<8x32xf32>
    %cst_38 = arith.constant dense<0.000000e+00> : vector<8x32xf32>
    %52 = tpu.matmul %14, %45, %cst_38 {dimension_numbers = #tpu.dot_dimension_numbers<[1], [0], [0], [1], [0, 0, 1, 1], [], []>} : vector<8x32xf32>, vector<32x32xf32>, vector<8x32xf32> -> vector<8x32xf32>
    %53 = vector.broadcast %46 : vector<1x32xf32> to vector<8x32xf32>
    %54 = arith.addf %52, %53 : vector<8x32xf32>
    %55 = math.tanh %54 : vector<8x32xf32>
    %56 = vector.broadcast %47 : vector<1x32xf32> to vector<8x32xf32>
    %57 = arith.mulf %51, %56 : vector<8x32xf32>
    %cst_39 = arith.constant dense<0.000000e+00> : vector<8xf32>
    %58 = vector.multi_reduction <add>, %57, %cst_39 [1] : vector<8x32xf32> to vector<8xf32>
    %59 = vector.shape_cast %58 : vector<8xf32> to vector<8x1xf32>
    %60 = vector.broadcast %47 : vector<1x32xf32> to vector<8x32xf32>
    %61 = arith.mulf %55, %60 : vector<8x32xf32>
    %cst_40 = arith.constant dense<0.000000e+00> : vector<8xf32>
    %62 = vector.multi_reduction <add>, %61, %cst_40 [1] : vector<8x32xf32> to vector<8xf32>
    %63 = vector.shape_cast %62 : vector<8xf32> to vector<8x1xf32>
    %64 = arith.subf %59, %63 : vector<8x1xf32>
    %65 = arith.negf %64 : vector<8x1xf32>
    %66 = math.exp %65 : vector<8x1xf32>
    %cst_41 = arith.constant 1.000000e+00 : f32
    %67 = vector.broadcast %cst_41 : f32 to vector<8x1xf32>
    %68 = arith.addf %67, %66 : vector<8x1xf32>
    %69 = arith.divf %67, %68 : vector<8x1xf32>
    %70 = arith.subf %11, %14 : vector<8x32xf32>
    %71 = vector.broadcast %69 : vector<8x1xf32> to vector<8x32xf32>
    %72 = arith.mulf %71, %70 : vector<8x32xf32>
    %73 = arith.addf %14, %72 : vector<8x32xf32>
    %c0_42 = arith.constant 0 : index
    %c0_43 = arith.constant 0 : index
    %74 = vector.load %arg15[%c0_42, %c0_43] : memref<32x32xf32, #tpu.memory_space<vmem>>, vector<32x32xf32>
    %c0_44 = arith.constant 0 : index
    %c0_45 = arith.constant 0 : index
    %75 = vector.load %arg16[%c0_44, %c0_45] : memref<1x32xf32, #tpu.memory_space<vmem>>, vector<1x32xf32>
    %c0_46 = arith.constant 0 : index
    %c0_47 = arith.constant 0 : index
    %76 = vector.load %arg17[%c0_46, %c0_47] : memref<1x32xf32, #tpu.memory_space<vmem>>, vector<1x32xf32>
    %cst_48 = arith.constant dense<0.000000e+00> : vector<8x32xf32>
    %77 = tpu.matmul %44, %74, %cst_48 {dimension_numbers = #tpu.dot_dimension_numbers<[1], [0], [0], [1], [0, 0, 1, 1], [], []>} : vector<8x32xf32>, vector<32x32xf32>, vector<8x32xf32> -> vector<8x32xf32>
    %78 = vector.broadcast %75 : vector<1x32xf32> to vector<8x32xf32>
    %79 = arith.addf %77, %78 : vector<8x32xf32>
    %80 = math.tanh %79 : vector<8x32xf32>
    %cst_49 = arith.constant dense<0.000000e+00> : vector<8x32xf32>
    %81 = tpu.matmul %73, %74, %cst_49 {dimension_numbers = #tpu.dot_dimension_numbers<[1], [0], [0], [1], [0, 0, 1, 1], [], []>} : vector<8x32xf32>, vector<32x32xf32>, vector<8x32xf32> -> vector<8x32xf32>
    %82 = vector.broadcast %75 : vector<1x32xf32> to vector<8x32xf32>
    %83 = arith.addf %81, %82 : vector<8x32xf32>
    %84 = math.tanh %83 : vector<8x32xf32>
    %85 = vector.broadcast %76 : vector<1x32xf32> to vector<8x32xf32>
    %86 = arith.mulf %80, %85 : vector<8x32xf32>
    %cst_50 = arith.constant dense<0.000000e+00> : vector<8xf32>
    %87 = vector.multi_reduction <add>, %86, %cst_50 [1] : vector<8x32xf32> to vector<8xf32>
    %88 = vector.shape_cast %87 : vector<8xf32> to vector<8x1xf32>
    %89 = vector.broadcast %76 : vector<1x32xf32> to vector<8x32xf32>
    %90 = arith.mulf %84, %89 : vector<8x32xf32>
    %cst_51 = arith.constant dense<0.000000e+00> : vector<8xf32>
    %91 = vector.multi_reduction <add>, %90, %cst_51 [1] : vector<8x32xf32> to vector<8xf32>
    %92 = vector.shape_cast %91 : vector<8xf32> to vector<8x1xf32>
    %93 = arith.subf %88, %92 : vector<8x1xf32>
    %94 = arith.negf %93 : vector<8x1xf32>
    %95 = math.exp %94 : vector<8x1xf32>
    %cst_52 = arith.constant 1.000000e+00 : f32
    %96 = vector.broadcast %cst_52 : f32 to vector<8x1xf32>
    %97 = arith.addf %96, %95 : vector<8x1xf32>
    %98 = arith.divf %96, %97 : vector<8x1xf32>
    %99 = arith.subf %44, %73 : vector<8x32xf32>
    %100 = vector.broadcast %98 : vector<8x1xf32> to vector<8x32xf32>
    %101 = arith.mulf %100, %99 : vector<8x32xf32>
    %102 = arith.addf %73, %101 : vector<8x32xf32>
    %c0_53 = arith.constant 0 : index
    %c0_54 = arith.constant 0 : index
    %103 = vector.load %arg20[%c0_53, %c0_54] : memref<8x32xf32, #tpu.memory_space<vmem>>, vector<8x32xf32>
    tpu.vector_store %arg20[%c0_53, %c0_54], %44 {strides = array<i32>} : memref<8x32xf32, #tpu.memory_space<vmem>>, vector<8x32xf32>,
    %c0_55 = arith.constant 0 : index
    %c0_56 = arith.constant 0 : index
    %104 = vector.load %arg21[%c0_55, %c0_56] : memref<8x32xf32, #tpu.memory_space<vmem>>, vector<8x32xf32>
    tpu.vector_store %arg21[%c0_55, %c0_56], %73 {strides = array<i32>} : memref<8x32xf32, #tpu.memory_space<vmem>>, vector<8x32xf32>,
    %c0_57 = arith.constant 0 : index
    %c0_58 = arith.constant 0 : index
    %105 = vector.load %arg22[%c0_57, %c0_58] : memref<8x32xf32, #tpu.memory_space<vmem>>, vector<8x32xf32>
    tpu.vector_store %arg22[%c0_57, %c0_58], %102 {strides = array<i32>} : memref<8x32xf32, #tpu.memory_space<vmem>>, vector<8x32xf32>,
    return
  }
  func.func @transform_0(%arg0: i32) -> (i32, i32) {
    %c0_i32 = arith.constant 0 : i32
    %c0_i32_0 = arith.constant 0 : i32
    return %arg0, %c0_i32 : i32, i32
  }
  func.func @transform_1(%arg0: i32) -> (i32, i32) {
    %c0_i32 = arith.constant 0 : i32
    %c0_i32_0 = arith.constant 0 : i32
    return %arg0, %c0_i32 : i32, i32
  }
  func.func @transform_2(%arg0: i32) -> (i32, i32) {
    %c0_i32 = arith.constant 0 : i32
    %c0_i32_0 = arith.constant 0 : i32
    return %arg0, %c0_i32 : i32, i32
  }
  func.func @transform_3(%arg0: i32) -> (i32, i32) {
    %c0_i32 = arith.constant 0 : i32
    %c0_i32_0 = arith.constant 0 : i32
    return %arg0, %c0_i32 : i32, i32
  }
  func.func @transform_4(%arg0: i32) -> (i32, i32) {
    %c0_i32 = arith.constant 0 : i32
    %c0_i32_0 = arith.constant 0 : i32
    %c0_i32_1 = arith.constant 0 : i32
    return %c0_i32, %c0_i32_0 : i32, i32
  }
  func.func @transform_5(%arg0: i32) -> (i32, i32) {
    %c0_i32 = arith.constant 0 : i32
    %c0_i32_0 = arith.constant 0 : i32
    %c0_i32_1 = arith.constant 0 : i32
    return %c0_i32, %c0_i32_0 : i32, i32
  }
  func.func @transform_6(%arg0: i32) -> (i32, i32) {
    %c0_i32 = arith.constant 0 : i32
    %c0_i32_0 = arith.constant 0 : i32
    %c0_i32_1 = arith.constant 0 : i32
    return %c0_i32, %c0_i32_0 : i32, i32
  }
  func.func @transform_7(%arg0: i32) -> (i32, i32) {
    %c0_i32 = arith.constant 0 : i32
    %c0_i32_0 = arith.constant 0 : i32
    %c0_i32_1 = arith.constant 0 : i32
    return %c0_i32, %c0_i32_0 : i32, i32
  }
  func.func @transform_8(%arg0: i32) -> (i32, i32) {
    %c0_i32 = arith.constant 0 : i32
    %c0_i32_0 = arith.constant 0 : i32
    %c0_i32_1 = arith.constant 0 : i32
    return %c0_i32, %c0_i32_0 : i32, i32
  }
  func.func @transform_9(%arg0: i32) -> (i32, i32) {
    %c0_i32 = arith.constant 0 : i32
    %c0_i32_0 = arith.constant 0 : i32
    %c0_i32_1 = arith.constant 0 : i32
    return %c0_i32, %c0_i32_0 : i32, i32
  }
  func.func @transform_10(%arg0: i32) -> (i32, i32) {
    %c0_i32 = arith.constant 0 : i32
    %c0_i32_0 = arith.constant 0 : i32
    %c0_i32_1 = arith.constant 0 : i32
    return %c0_i32, %c0_i32_0 : i32, i32
  }
  func.func @transform_11(%arg0: i32) -> (i32, i32) {
    %c0_i32 = arith.constant 0 : i32
    %c0_i32_0 = arith.constant 0 : i32
    %c0_i32_1 = arith.constant 0 : i32
    return %c0_i32, %c0_i32_0 : i32, i32
  }
  func.func @transform_12(%arg0: i32) -> (i32, i32) {
    %c0_i32 = arith.constant 0 : i32
    %c0_i32_0 = arith.constant 0 : i32
    %c0_i32_1 = arith.constant 0 : i32
    return %c0_i32, %c0_i32_0 : i32, i32
  }
  func.func @transform_13(%arg0: i32) -> (i32, i32) {
    %c0_i32 = arith.constant 0 : i32
    %c0_i32_0 = arith.constant 0 : i32
    %c0_i32_1 = arith.constant 0 : i32
    return %c0_i32, %c0_i32_0 : i32, i32
  }
  func.func @transform_14(%arg0: i32) -> (i32, i32) {
    %c0_i32 = arith.constant 0 : i32
    %c0_i32_0 = arith.constant 0 : i32
    %c0_i32_1 = arith.constant 0 : i32
    return %c0_i32, %c0_i32_0 : i32, i32
  }
  func.func @transform_15(%arg0: i32) -> (i32, i32) {
    %c0_i32 = arith.constant 0 : i32
    %c0_i32_0 = arith.constant 0 : i32
    %c0_i32_1 = arith.constant 0 : i32
    return %c0_i32, %c0_i32_0 : i32, i32
  }
  func.func @transform_16(%arg0: i32) -> (i32, i32) {
    %c0_i32 = arith.constant 0 : i32
    %c0_i32_0 = arith.constant 0 : i32
    %c0_i32_1 = arith.constant 0 : i32
    return %c0_i32, %c0_i32_0 : i32, i32
  }
  func.func @transform_17(%arg0: i32) -> (i32, i32) {
    %c0_i32 = arith.constant 0 : i32
    %c0_i32_0 = arith.constant 0 : i32
    return %arg0, %c0_i32 : i32, i32
  }
  func.func @transform_18(%arg0: i32) -> (i32, i32) {
    %c0_i32 = arith.constant 0 : i32
    %c0_i32_0 = arith.constant 0 : i32
    return %arg0, %c0_i32 : i32, i32
  }
  func.func @transform_19(%arg0: i32) -> (i32, i32) {
    %c0_i32 = arith.constant 0 : i32
    %c0_i32_0 = arith.constant 0 : i32
    return %arg0, %c0_i32 : i32, i32
  }
  func.func @transform_20(%arg0: i32) -> (i32, i32) {
    %c0_i32 = arith.constant 0 : i32
    %c0_i32_0 = arith.constant 0 : i32
    return %arg0, %c0_i32 : i32, i32
  }
  func.func @transform_21(%arg0: i32) -> (i32, i32) {
    %c0_i32 = arith.constant 0 : i32
    %c0_i32_0 = arith.constant 0 : i32
    return %arg0, %c0_i32 : i32, i32
  }
}

</mosaic_0001>

<llo_original>
// kernel: tpu_custom_call.1
$region0: #{tpu_custom_call.1}
  #allocation0 [shape = 'u32[]', space=smem, size = 0x4, offset = 0x4, fixed_abs, tag = 'smem constant byte address 0x4 - core index']
  #allocation1 [shape = 'u32[72,128]{1,0:T(1,128)}', space=vmem, size = 0x9000, scoped, tag = 'internal scratch']
  %s0 = inlined_call_operand.vmem [shape: f32[16,24], index: 0, kind: input, shape index: {}]
  %s1 = inlined_call_operand.hbm [shape: f32[16,48], index: 1, kind: input, shape index: {}]
  %s2 = inlined_call_operand.hbm [shape: f32[16,32], index: 2, kind: input, shape index: {}]
  %s3 = inlined_call_operand.hbm [shape: f32[16,32], index: 3, kind: input, shape index: {}]
  %s4 = inlined_call_operand.hbm [shape: f32[24,32], index: 4, kind: input, shape index: {}]
  %s5 = inlined_call_operand.vmem [shape: f32[1,32], index: 5, kind: input, shape index: {}]
  %s6 = inlined_call_operand.vmem [shape: f32[48,32], index: 6, kind: input, shape index: {}]
  %s7 = inlined_call_operand.vmem [shape: f32[1,32], index: 7, kind: input, shape index: {}]
  %s8 = inlined_call_operand.vmem [shape: f32[32,32], index: 8, kind: input, shape index: {}]
  %s9 = inlined_call_operand.vmem [shape: f32[1,32], index: 9, kind: input, shape index: {}]
  %s10 = inlined_call_operand.vmem [shape: f32[1,32], index: 10, kind: input, shape index: {}]
  %s11 = inlined_call_operand.vmem [shape: f32[32,32], index: 11, kind: input, shape index: {}]
  %s12 = inlined_call_operand.vmem [shape: f32[1,32], index: 12, kind: input, shape index: {}]
  %s13 = inlined_call_operand.vmem [shape: f32[1,32], index: 13, kind: input, shape index: {}]
  %s14 = inlined_call_operand.hbm [shape: f32[32,32], index: 14, kind: input, shape index: {}]
  %s15 = inlined_call_operand.vmem [shape: f32[1,32], index: 15, kind: input, shape index: {}]
  %s16 = inlined_call_operand.vmem [shape: f32[1,32], index: 16, kind: input, shape index: {}]
  %s17 = inlined_call_operand.hbm [shape: f32[16,32], index: 17, kind: output, shape index: {0}]
  %s18 = inlined_call_operand.hbm [shape: f32[16,32], index: 18, kind: output, shape index: {1}]
  %s19 = inlined_call_operand.hbm [shape: f32[16,32], index: 19, kind: output, shape index: {2}]
  %s20 = inlined_call_operand.hbm [shape: f32[16,32], index: 20, kind: output, shape index: {3}]
  %s21 = inlined_call_operand.hbm [shape: f32[16,32], index: 21, kind: output, shape index: {4}]
  %22 = xla_tuple %s17, %s18, %s19, %s20, %s21
  %s23 = sld [smem:[#allocation0]]
  $region153: #{tpu_custom_call.1} parent=0
    _
  %s25 = ssub.s32 1, %s23
  %s26 = scalar_select 0, %s25, %s23
  $region1: #{tpu_custom_call.1} parent=0
    #allocation2 [shape = 'u8[8192]{0}', space=vmem, size = 0x2000, scoped, tag = 'input window, operand 1']
    #allocation3 [shape = 's32[2]{0}', space=sflag, size = 0x8, scoped, tag = 'scoped memory for tpu_custom_call.1']
    #allocation4 [shape = 's32[2]{0}', space=sflag, size = 0x8, scoped, tag = 'scoped memory for tpu_custom_call.1']
    #allocation5 [shape = 'u8[8192]{0}', space=vmem, size = 0x2000, scoped, tag = 'input window, operand 2']
    #allocation6 [shape = 's32[2]{0}', space=sflag, size = 0x8, scoped, tag = 'scoped memory for tpu_custom_call.1']
    #allocation7 [shape = 'u8[8192]{0}', space=vmem, size = 0x2000, scoped, tag = 'input window, operand 3']
    #allocation8 [shape = 'u8[12288]{0}', space=vmem, size = 0x3000, scoped, tag = 'input window, operand 4, single buffered']
    #allocation9 [shape = 's32[1]{0}', space=sflag, size = 0x4, scoped, tag = 'scoped memory for tpu_custom_call.1']
    #allocation10 [shape = 'u8[16384]{0}', space=vmem, size = 0x4000, scoped, tag = 'input window, operand 14, single buffered']
    #allocation11 [shape = 'u8[8192]{0}', space=vmem, size = 0x2000, scoped, tag = 'output window, operand 0']
    #allocation12 [shape = 'u8[8192]{0}', space=vmem, size = 0x2000, scoped, tag = 'output window, operand 1']
    #allocation13 [shape = 's32[2]{0}', space=sflag, size = 0x8, scoped, tag = 'scoped memory for tpu_custom_call.1']
    #allocation14 [shape = 'u8[8192]{0}', space=vmem, size = 0x2000, scoped, tag = 'output window, operand 2']
    #allocation15 [shape = 'u8[8192]{0}', space=vmem, size = 0x2000, scoped, tag = 'output window, operand 3']
    #allocation16 [shape = 's32[2]{0}', space=sflag, size = 0x8, scoped, tag = 'scoped memory for tpu_custom_call.1']
    #allocation17 [shape = 'u8[8192]{0}', space=vmem, size = 0x2000, scoped, tag = 'output window, operand 4']
    %27 = vsyncpa [#allocation3], 0
    %s28 = scalar_lea.sflag [#allocation3], 1
    %29 = vsyncpa %s28, 0
    %30 = vsyncpa [#allocation6], 0
    %s31 = scalar_lea.sflag [#allocation6], 1
    %32 = vsyncpa %s31, 0
    %33 = vsyncpa [#allocation9], 0
    %34 = vsyncpa [#allocation4], 0
    %s35 = scalar_lea.sflag [#allocation4], 1
    %36 = vsyncpa %s35, 0
    %37 = vsyncpa [#allocation13], 0
    %s38 = scalar_lea.sflag [#allocation13], 1
    %39 = vsyncpa %s38, 0
    %40 = vsyncpa [#allocation16], 0
    %s41 = scalar_lea.sflag [#allocation16], 1
    %42 = vsyncpa %s41, 0
    loop: start=0, step=1, limit=4
    $region2: #{tpu_custom_call.1} parent=1 // loop_pre_header
      _
    $region3: #{tpu_custom_call.1} parent=1 // loop_header
      %s44 = sphi 0, %s48
      %p45 = scmp.ge.s32.totalorder %s44, 4
      %s54 = sphi 0, %s56
      %s57 = sphi 0, %s54
      %s58 = sphi 0, %s57
      %s74 = sphi 0, %s58
      %s80 = sphi 0, %s82
      %s83 = sphi 0, %s80
      %s84 = sphi 0, %s83
      %s100 = sphi 0, %s84
      %s106 = sphi 0, %s108
      %s109 = sphi 0, %s106
      %s110 = sphi 0, %s109
      %s126 = sphi 0, %s110
      %s132 = sphi 0, %s134
      %s135 = sphi 0, %s132
      %s136 = sphi 0, %s135
      %s152 = sphi 0, %s136
      %s156 = sphi 0, %s156
      %s158 = sphi 0, %s156
      %s159 = sphi 0, %s158
      %s173 = sphi 0, %s159
      %s177 = sphi 0, %s177
      %s179 = sphi 0, %s177
      %s180 = sphi 0, %s179
      %s194 = sphi 0, %s180
      %s198 = sphi 0, %s198
      %s200 = sphi 0, %s198
      %s201 = sphi 0, %s200
      %s215 = sphi 0, %s201
      %s219 = sphi 0, %s219
      %s221 = sphi 0, %s219
      %s222 = sphi 0, %s221
      %s236 = sphi 0, %s222
      %s240 = sphi 0, %s240
      %s242 = sphi 0, %s240
      %s243 = sphi 0, %s242
      %s257 = sphi 0, %s243
      %s261 = sphi 0, %s261
      %s263 = sphi 0, %s261
      %s264 = sphi 0, %s263
      %s278 = sphi 0, %s264
      %s282 = sphi 0, %s282
      %s284 = sphi 0, %s282
      %s285 = sphi 0, %s284
      %s299 = sphi 0, %s285
      %s303 = sphi 0, %s303
      %s305 = sphi 0, %s303
      %s306 = sphi 0, %s305
      %s320 = sphi 0, %s306
      %s324 = sphi 0, %s324
      %s326 = sphi 0, %s324
      %s327 = sphi 0, %s326
      %s341 = sphi 0, %s327
      %s345 = sphi 0, %s345
      %s347 = sphi 0, %s345
      %s348 = sphi 0, %s347
      %s362 = sphi 0, %s348
      %s366 = sphi 0, %s366
      %s368 = sphi 0, %s366
      %s369 = sphi 0, %s368
      %s383 = sphi 0, %s369
      %s387 = sphi 0, %s387
      %s389 = sphi 0, %s387
      %s390 = sphi 0, %s389
      %s404 = sphi 0, %s390
      %s408 = sphi 0, %s408
      %s410 = sphi 0, %s408
      %s411 = sphi 0, %s410
      %s425 = sphi 0, %s411
      %s431 = sphi 0, %s433
      %s434 = sphi 0, %s431
      %s435 = sphi 0, %s434
      %s451 = sphi 0, %s435
      %s457 = sphi 0, %s459
      %s460 = sphi 0, %s457
      %s461 = sphi 0, %s460
      %s477 = sphi 0, %s461
      %s483 = sphi 0, %s485
      %s486 = sphi 0, %s483
      %s487 = sphi 0, %s486
      %s503 = sphi 0, %s487
      %s509 = sphi 0, %s511
      %s512 = sphi 0, %s509
      %s513 = sphi 0, %s512
      %s529 = sphi 0, %s513
      %s535 = sphi 0, %s537
      %s538 = sphi 0, %s535
      %s539 = sphi 0, %s538
      %s555 = sphi 0, %s539
    $region4: #{tpu_custom_call.1} parent=1 // loop_header_branch
      %47 = sbr.rel (%p45) target = $region8
    $region5: #{tpu_custom_call.1} parent=1 // loop_body
      %s49 = ssub.s32 %s44, 1
      %s50 = ssub.s32 %s44, 2
      %s51 = sadd.s32 %s44, 1
      %s52 = ssub.s32 %s44, %s51
      %p53 = scmp.eq.s32.totalorder %s52, 0
      %s55 = sadd.s32 %s54, 1
      %s56 = scalar_select %p53, %s54, %s55
      %p59 = pneg %p53
      %p60 = scmp.eq.s32.totalorder %s44, 1
      %p61 = por %p59, %p60
      %p62 = scmp.ne.s32.totalorder %s54, %s57
      %p63 = scmp.eq.s32.totalorder %s44, 0
      %p64 = por %p62, %p63
      %p65 = scmp.ne.s32.totalorder %s54, %s57
      %p66 = scmp.eq.s32.totalorder %s49, 1
      %p67 = por %p65, %p66
      %p68 = scmp.ne.s32.totalorder %s57, %s58
      %p69 = scmp.eq.s32.totalorder %s49, 0
      %p70 = por %p68, %p69
      %p71 = scmp.ne.s32.totalorder %s57, %s58
      %p72 = scmp.eq.s32.totalorder %s50, 1
      %p73 = por %p71, %p72
      %p75 = scmp.ne.s32.totalorder %s58, %s74
      %p76 = scmp.eq.s32.totalorder %s50, 0
      %p77 = por %p75, %p76
      %s78 = ssub.s32 %s44, %s51
      %p79 = scmp.eq.s32.totalorder %s78, 0
      %s81 = sadd.s32 %s80, 1
      %s82 = scalar_select %p79, %s80, %s81
      %p85 = pneg %p79
      %p86 = scmp.eq.s32.totalorder %s44, 1
      %p87 = por %p85, %p86
      %p88 = scmp.ne.s32.totalorder %s80, %s83
      %p89 = scmp.eq.s32.totalorder %s44, 0
      %p90 = por %p88, %p89
      %p91 = scmp.ne.s32.totalorder %s80, %s83
      %p92 = scmp.eq.s32.totalorder %s49, 1
      %p93 = por %p91, %p92
      %p94 = scmp.ne.s32.totalorder %s83, %s84
      %p95 = scmp.eq.s32.totalorder %s49, 0
      %p96 = por %p94, %p95
      %p97 = scmp.ne.s32.totalorder %s83, %s84
      %p98 = scmp.eq.s32.totalorder %s50, 1
      %p99 = por %p97, %p98
      %p101 = scmp.ne.s32.totalorder %s84, %s100
      %p102 = scmp.eq.s32.totalorder %s50, 0
      %p103 = por %p101, %p102
      %s104 = ssub.s32 %s44, %s51
      %p105 = scmp.eq.s32.totalorder %s104, 0
      %s107 = sadd.s32 %s106, 1
      %s108 = scalar_select %p105, %s106, %s107
      %p111 = pneg %p105
      %p112 = scmp.eq.s32.totalorder %s44, 1
      %p113 = por %p111, %p112
      %p114 = scmp.ne.s32.totalorder %s106, %s109
      %p115 = scmp.eq.s32.totalorder %s44, 0
      %p116 = por %p114, %p115
      %p117 = scmp.ne.s32.totalorder %s106, %s109
      %p118 = scmp.eq.s32.totalorder %s49, 1
      %p119 = por %p117, %p118
      %p120 = scmp.ne.s32.totalorder %s109, %s110
      %p121 = scmp.eq.s32.totalorder %s49, 0
      %p122 = por %p120, %p121
      %p123 = scmp.ne.s32.totalorder %s109, %s110
      %p124 = scmp.eq.s32.totalorder %s50, 1
      %p125 = por %p123, %p124
      %p127 = scmp.ne.s32.totalorder %s110, %s126
      %p128 = scmp.eq.s32.totalorder %s50, 0
      %p129 = por %p127, %p128
      %s130 = ssub.s32 %s44, %s51
      %p131 = scmp.eq.s32.totalorder %s130, 0
      %s133 = sadd.s32 %s132, 1
      %s134 = scalar_select %p131, %s132, %s133
      %p137 = pneg %p131
      %p138 = scmp.eq.s32.totalorder %s44, 1
      %p139 = por %p137, %p138
      %p140 = scmp.ne.s32.totalorder %s132, %s135
      %p141 = scmp.eq.s32.totalorder %s44, 0
      %p142 = por %p140, %p141
      %p143 = scmp.ne.s32.totalorder %s132, %s135
      %p144 = scmp.eq.s32.totalorder %s49, 1
      %p145 = por %p143, %p144
      %p146 = scmp.ne.s32.totalorder %s135, %s136
      %p147 = scmp.eq.s32.totalorder %s49, 0
      %p148 = por %p146, %p147
      %p149 = scmp.ne.s32.totalorder %s135, %s136
      %p150 = scmp.eq.s32.totalorder %s50, 1
      %p151 = por %p149, %p150
      %p153 = scmp.ne.s32.totalorder %s136, %s152
      %p154 = scmp.eq.s32.totalorder %s50, 0
      %p155 = por %p153, %p154
      %s157 = sadd.s32 %s156, 1
      %p160 = scmp.eq.s32.totalorder %s44, 1
      %p161 = scmp.ne.s32.totalorder %s156, %s158
      %p162 = scmp.eq.s32.totalorder %s44, 0
      %p163 = por %p161, %p162
      %p164 = scmp.ne.s32.totalorder %s156, %s158
      %p165 = scmp.eq.s32.totalorder %s49, 1
      %p166 = por %p164, %p165
      %p167 = scmp.ne.s32.totalorder %s158, %s159
      %p168 = scmp.eq.s32.totalorder %s49, 0
      %p169 = por %p167, %p168
      %p170 = scmp.ne.s32.totalorder %s158, %s159
      %p171 = scmp.eq.s32.totalorder %s50, 1
      %p172 = por %p170, %p171
      %p174 = scmp.ne.s32.totalorder %s159, %s173
      %p175 = scmp.eq.s32.totalorder %s50, 0
      %p176 = por %p174, %p175
      %s178 = sadd.s32 %s177, 1
      %p181 = scmp.eq.s32.totalorder %s44, 1
      %p182 = scmp.ne.s32.totalorder %s177, %s179
      %p183 = scmp.eq.s32.totalorder %s44, 0
      %p184 = por %p182, %p183
      %p185 = scmp.ne.s32.totalorder %s177, %s179
      %p186 = scmp.eq.s32.totalorder %s49, 1
      %p187 = por %p185, %p186
      %p188 = scmp.ne.s32.totalorder %s179, %s180
      %p189 = scmp.eq.s32.totalorder %s49, 0
      %p190 = por %p188, %p189
      %p191 = scmp.ne.s32.totalorder %s179, %s180
      %p192 = scmp.eq.s32.totalorder %s50, 1
      %p193 = por %p191, %p192
      %p195 = scmp.ne.s32.totalorder %s180, %s194
      %p196 = scmp.eq.s32.totalorder %s50, 0
      %p197 = por %p195, %p196
      %s199 = sadd.s32 %s198, 1
      %p202 = scmp.eq.s32.totalorder %s44, 1
      %p203 = scmp.ne.s32.totalorder %s198, %s200
      %p204 = scmp.eq.s32.totalorder %s44, 0
      %p205 = por %p203, %p204
      %p206 = scmp.ne.s32.totalorder %s198, %s200
      %p207 = scmp.eq.s32.totalorder %s49, 1
      %p208 = por %p206, %p207
      %p209 = scmp.ne.s32.totalorder %s200, %s201
      %p210 = scmp.eq.s32.totalorder %s49, 0
      %p211 = por %p209, %p210
      %p212 = scmp.ne.s32.totalorder %s200, %s201
      %p213 = scmp.eq.s32.totalorder %s50, 1
      %p214 = por %p212, %p213
      %p216 = scmp.ne.s32.totalorder %s201, %s215
      %p217 = scmp.eq.s32.totalorder %s50, 0
      %p218 = por %p216, %p217
      %s220 = sadd.s32 %s219, 1
      %p223 = scmp.eq.s32.totalorder %s44, 1
      %p224 = scmp.ne.s32.totalorder %s219, %s221
      %p225 = scmp.eq.s32.totalorder %s44, 0
      %p226 = por %p224, %p225
      %p227 = scmp.ne.s32.totalorder %s219, %s221
      %p228 = scmp.eq.s32.totalorder %s49, 1
      %p229 = por %p227, %p228
      %p230 = scmp.ne.s32.totalorder %s221, %s222
      %p231 = scmp.eq.s32.totalorder %s49, 0
      %p232 = por %p230, %p231
      %p233 = scmp.ne.s32.totalorder %s221, %s222
      %p234 = scmp.eq.s32.totalorder %s50, 1
      %p235 = por %p233, %p234
      %p237 = scmp.ne.s32.totalorder %s222, %s236
      %p238 = scmp.eq.s32.totalorder %s50, 0
      %p239 = por %p237, %p238
      %s241 = sadd.s32 %s240, 1
      %p244 = scmp.eq.s32.totalorder %s44, 1
      %p245 = scmp.ne.s32.totalorder %s240, %s242
      %p246 = scmp.eq.s32.totalorder %s44, 0
      %p247 = por %p245, %p246
      %p248 = scmp.ne.s32.totalorder %s240, %s242
      %p249 = scmp.eq.s32.totalorder %s49, 1
      %p250 = por %p248, %p249
      %p251 = scmp.ne.s32.totalorder %s242, %s243
      %p252 = scmp.eq.s32.totalorder %s49, 0
      %p253 = por %p251, %p252
      %p254 = scmp.ne.s32.totalorder %s242, %s243
      %p255 = scmp.eq.s32.totalorder %s50, 1
      %p256 = por %p254, %p255
      %p258 = scmp.ne.s32.totalorder %s243, %s257
      %p259 = scmp.eq.s32.totalorder %s50, 0
      %p260 = por %p258, %p259
      %s262 = sadd.s32 %s261, 1
      %p265 = scmp.eq.s32.totalorder %s44, 1
      %p266 = scmp.ne.s32.totalorder %s261, %s263
      %p267 = scmp.eq.s32.totalorder %s44, 0
      %p268 = por %p266, %p267
      %p269 = scmp.ne.s32.totalorder %s261, %s263
      %p270 = scmp.eq.s32.totalorder %s49, 1
      %p271 = por %p269, %p270
      %p272 = scmp.ne.s32.totalorder %s263, %s264
      %p273 = scmp.eq.s32.totalorder %s49, 0
      %p274 = por %p272, %p273
      %p275 = scmp.ne.s32.totalorder %s263, %s264
      %p276 = scmp.eq.s32.totalorder %s50, 1
      %p277 = por %p275, %p276
      %p279 = scmp.ne.s32.totalorder %s264, %s278
      %p280 = scmp.eq.s32.totalorder %s50, 0
      %p281 = por %p279, %p280
      %s283 = sadd.s32 %s282, 1
      %p286 = scmp.eq.s32.totalorder %s44, 1
      %p287 = scmp.ne.s32.totalorder %s282, %s284
      %p288 = scmp.eq.s32.totalorder %s44, 0
      %p289 = por %p287, %p288
      %p290 = scmp.ne.s32.totalorder %s282, %s284
      %p291 = scmp.eq.s32.totalorder %s49, 1
      %p292 = por %p290, %p291
      %p293 = scmp.ne.s32.totalorder %s284, %s285
      %p294 = scmp.eq.s32.totalorder %s49, 0
      %p295 = por %p293, %p294
      %p296 = scmp.ne.s32.totalorder %s284, %s285
      %p297 = scmp.eq.s32.totalorder %s50, 1
      %p298 = por %p296, %p297
      %p300 = scmp.ne.s32.totalorder %s285, %s299
      %p301 = scmp.eq.s32.totalorder %s50, 0
      %p302 = por %p300, %p301
      %s304 = sadd.s32 %s303, 1
      %p307 = scmp.eq.s32.totalorder %s44, 1
      %p308 = scmp.ne.s32.totalorder %s303, %s305
      %p309 = scmp.eq.s32.totalorder %s44, 0
      %p310 = por %p308, %p309
      %p311 = scmp.ne.s32.totalorder %s303, %s305
      %p312 = scmp.eq.s32.totalorder %s49, 1
      %p313 = por %p311, %p312
      %p314 = scmp.ne.s32.totalorder %s305, %s306
      %p315 = scmp.eq.s32.totalorder %s49, 0
      %p316 = por %p314, %p315
      %p317 = scmp.ne.s32.totalorder %s305, %s306
      %p318 = scmp.eq.s32.totalorder %s50, 1
      %p319 = por %p317, %p318
      %p321 = scmp.ne.s32.totalorder %s306, %s320
      %p322 = scmp.eq.s32.totalorder %s50, 0
      %p323 = por %p321, %p322
      %s325 = sadd.s32 %s324, 1
      %p328 = scmp.eq.s32.totalorder %s44, 1
      %p329 = scmp.ne.s32.totalorder %s324, %s326
      %p330 = scmp.eq.s32.totalorder %s44, 0
      %p331 = por %p329, %p330
      %p332 = scmp.ne.s32.totalorder %s324, %s326
      %p333 = scmp.eq.s32.totalorder %s49, 1
      %p334 = por %p332, %p333
      %p335 = scmp.ne.s32.totalorder %s326, %s327
      %p336 = scmp.eq.s32.totalorder %s49, 0
      %p337 = por %p335, %p336
      %p338 = scmp.ne.s32.totalorder %s326, %s327
      %p339 = scmp.eq.s32.totalorder %s50, 1
      %p340 = por %p338, %p339
      %p342 = scmp.ne.s32.totalorder %s327, %s341
      %p343 = scmp.eq.s32.totalorder %s50, 0
      %p344 = por %p342, %p343
      %s346 = sadd.s32 %s345, 1
      %p349 = scmp.eq.s32.totalorder %s44, 1
      %p350 = scmp.ne.s32.totalorder %s345, %s347
      %p351 = scmp.eq.s32.totalorder %s44, 0
      %p352 = por %p350, %p351
      %p353 = scmp.ne.s32.totalorder %s345, %s347
      %p354 = scmp.eq.s32.totalorder %s49, 1
      %p355 = por %p353, %p354
      %p356 = scmp.ne.s32.totalorder %s347, %s348
      %p357 = scmp.eq.s32.totalorder %s49, 0
      %p358 = por %p356, %p357
      %p359 = scmp.ne.s32.totalorder %s347, %s348
      %p360 = scmp.eq.s32.totalorder %s50, 1
      %p361 = por %p359, %p360
      %p363 = scmp.ne.s32.totalorder %s348, %s362
      %p364 = scmp.eq.s32.totalorder %s50, 0
      %p365 = por %p363, %p364
      %s367 = sadd.s32 %s366, 1
      %p370 = scmp.eq.s32.totalorder %s44, 1
      %p371 = scmp.ne.s32.totalorder %s366, %s368
      %p372 = scmp.eq.s32.totalorder %s44, 0
      %p373 = por %p371, %p372
      %p374 = scmp.ne.s32.totalorder %s366, %s368
      %p375 = scmp.eq.s32.totalorder %s49, 1
      %p376 = por %p374, %p375
      %p377 = scmp.ne.s32.totalorder %s368, %s369
      %p378 = scmp.eq.s32.totalorder %s49, 0
      %p379 = por %p377, %p378
      %p380 = scmp.ne.s32.totalorder %s368, %s369
      %p381 = scmp.eq.s32.totalorder %s50, 1
      %p382 = por %p380, %p381
      %p384 = scmp.ne.s32.totalorder %s369, %s383
      %p385 = scmp.eq.s32.totalorder %s50, 0
      %p386 = por %p384, %p385
      %s388 = sadd.s32 %s387, 1
      %p391 = scmp.eq.s32.totalorder %s44, 1
      %p392 = scmp.ne.s32.totalorder %s387, %s389
      %p393 = scmp.eq.s32.totalorder %s44, 0
      %p394 = por %p392, %p393
      %p395 = scmp.ne.s32.totalorder %s387, %s389
      %p396 = scmp.eq.s32.totalorder %s49, 1
      %p397 = por %p395, %p396
      %p398 = scmp.ne.s32.totalorder %s389, %s390
      %p399 = scmp.eq.s32.totalorder %s49, 0
      %p400 = por %p398, %p399
      %p401 = scmp.ne.s32.totalorder %s389, %s390
      %p402 = scmp.eq.s32.totalorder %s50, 1
      %p403 = por %p401, %p402
      %p405 = scmp.ne.s32.totalorder %s390, %s404
      %p406 = scmp.eq.s32.totalorder %s50, 0
      %p407 = por %p405, %p406
      %s409 = sadd.s32 %s408, 1
      %p412 = scmp.eq.s32.totalorder %s44, 1
      %p413 = scmp.ne.s32.totalorder %s408, %s410
      %p414 = scmp.eq.s32.totalorder %s44, 0
      %p415 = por %p413, %p414
      %p416 = scmp.ne.s32.totalorder %s408, %s410
      %p417 = scmp.eq.s32.totalorder %s49, 1
      %p418 = por %p416, %p417
      %p419 = scmp.ne.s32.totalorder %s410, %s411
      %p420 = scmp.eq.s32.totalorder %s49, 0
      %p421 = por %p419, %p420
      %p422 = scmp.ne.s32.totalorder %s410, %s411
      %p423 = scmp.eq.s32.totalorder %s50, 1
      %p424 = por %p422, %p423
      %p426 = scmp.ne.s32.totalorder %s411, %s425
      %p427 = scmp.eq.s32.totalorder %s50, 0
      %p428 = por %p426, %p427
      %s429 = ssub.s32 %s44, %s51
      %p430 = scmp.eq.s32.totalorder %s429, 0
      %s432 = sadd.s32 %s431, 1
      %s433 = scalar_select %p430, %s431, %s432
      %p436 = pneg %p430
      %p437 = scmp.eq.s32.totalorder %s44, 1
      %p438 = por %p436, %p437
      %p439 = scmp.ne.s32.totalorder %s431, %s434
      %p440 = scmp.eq.s32.totalorder %s44, 0
      %p441 = por %p439, %p440
      %p442 = scmp.ne.s32.totalorder %s431, %s434
      %p443 = scmp.eq.s32.totalorder %s49, 1
      %p444 = por %p442, %p443
      %p445 = scmp.ne.s32.totalorder %s434, %s435
      %p446 = scmp.eq.s32.totalorder %s49, 0
      %p447 = por %p445, %p446
      %p448 = scmp.ne.s32.totalorder %s434, %s435
      %p449 = scmp.eq.s32.totalorder %s50, 1
      %p450 = por %p448, %p449
      %p452 = scmp.ne.s32.totalorder %s435, %s451
      %p453 = scmp.eq.s32.totalorder %s50, 0
      %p454 = por %p452, %p453
      %s455 = ssub.s32 %s44, %s51
      %p456 = scmp.eq.s32.totalorder %s455, 0
      %s458 = sadd.s32 %s457, 1
      %s459 = scalar_select %p456, %s457, %s458
      %p462 = pneg %p456
      %p463 = scmp.eq.s32.totalorder %s44, 1
      %p464 = por %p462, %p463
      %p465 = scmp.ne.s32.totalorder %s457, %s460
      %p466 = scmp.eq.s32.totalorder %s44, 0
      %p467 = por %p465, %p466
      %p468 = scmp.ne.s32.totalorder %s457, %s460
      %p469 = scmp.eq.s32.totalorder %s49, 1
      %p470 = por %p468, %p469
      %p471 = scmp.ne.s32.totalorder %s460, %s461
      %p472 = scmp.eq.s32.totalorder %s49, 0
      %p473 = por %p471, %p472
      %p474 = scmp.ne.s32.totalorder %s460, %s461
      %p475 = scmp.eq.s32.totalorder %s50, 1
      %p476 = por %p474, %p475
      %p478 = scmp.ne.s32.totalorder %s461, %s477
      %p479 = scmp.eq.s32.totalorder %s50, 0
      %p480 = por %p478, %p479
      %s481 = ssub.s32 %s44, %s51
      %p482 = scmp.eq.s32.totalorder %s481, 0
      %s484 = sadd.s32 %s483, 1
      %s485 = scalar_select %p482, %s483, %s484
      %p488 = pneg %p482
      %p489 = scmp.eq.s32.totalorder %s44, 1
      %p490 = por %p488, %p489
      %p491 = scmp.ne.s32.totalorder %s483, %s486
      %p492 = scmp.eq.s32.totalorder %s44, 0
      %p493 = por %p491, %p492
      %p494 = scmp.ne.s32.totalorder %s483, %s486
      %p495 = scmp.eq.s32.totalorder %s49, 1
      %p496 = por %p494, %p495
      %p497 = scmp.ne.s32.totalorder %s486, %s487
      %p498 = scmp.eq.s32.totalorder %s49, 0
      %p499 = por %p497, %p498
      %p500 = scmp.ne.s32.totalorder %s486, %s487
      %p501 = scmp.eq.s32.totalorder %s50, 1
      %p502 = por %p500, %p501
      %p504 = scmp.ne.s32.totalorder %s487, %s503
      %p505 = scmp.eq.s32.totalorder %s50, 0
      %p506 = por %p504, %p505
      %s507 = ssub.s32 %s44, %s51
      %p508 = scmp.eq.s32.totalorder %s507, 0
      %s510 = sadd.s32 %s509, 1
      %s511 = scalar_select %p508, %s509, %s510
      %p514 = pneg %p508
      %p515 = scmp.eq.s32.totalorder %s44, 1
      %p516 = por %p514, %p515
      %p517 = scmp.ne.s32.totalorder %s509, %s512
      %p518 = scmp.eq.s32.totalorder %s44, 0
      %p519 = por %p517, %p518
      %p520 = scmp.ne.s32.totalorder %s509, %s512
      %p521 = scmp.eq.s32.totalorder %s49, 1
      %p522 = por %p520, %p521
      %p523 = scmp.ne.s32.totalorder %s512, %s513
      %p524 = scmp.eq.s32.totalorder %s49, 0
      %p525 = por %p523, %p524
      %p526 = scmp.ne.s32.totalorder %s512, %s513
      %p527 = scmp.eq.s32.totalorder %s50, 1
      %p528 = por %p526, %p527
      %p530 = scmp.ne.s32.totalorder %s513, %s529
      %p531 = scmp.eq.s32.totalorder %s50, 0
      %p532 = por %p530, %p531
      %s533 = ssub.s32 %s44, %s51
      %p534 = scmp.eq.s32.totalorder %s533, 0
      %s536 = sadd.s32 %s535, 1
      %s537 = scalar_select %p534, %s535, %s536
      %p540 = pneg %p534
      %p541 = scmp.eq.s32.totalorder %s44, 1
      %p542 = por %p540, %p541
      %p543 = scmp.ne.s32.totalorder %s535, %s538
      %p544 = scmp.eq.s32.totalorder %s44, 0
      %p545 = por %p543, %p544
      %p546 = scmp.ne.s32.totalorder %s535, %s538
      %p547 = scmp.eq.s32.totalorder %s49, 1
      %p548 = por %p546, %p547
      %p549 = scmp.ne.s32.totalorder %s538, %s539
      %p550 = scmp.eq.s32.totalorder %s49, 0
      %p551 = por %p549, %p550
      %p552 = scmp.ne.s32.totalorder %s538, %s539
      %p553 = scmp.eq.s32.totalorder %s50, 1
      %p554 = por %p552, %p553
      %p556 = scmp.ne.s32.totalorder %s539, %s555
      %p557 = scmp.eq.s32.totalorder %s50, 0
      %p558 = por %p556, %p557
      %p559 = scmp.le.s32.totalorder 1, %s44
      %p560 = scmp.lt.s32.totalorder %s44, 3
      %p561 = pnand %p559, %p560
      %p562 = pneg %p561
      // Predicated region
      $region9: #{tpu_custom_call.1} parent=5 // pred_check
        _
      $region10: #{tpu_custom_call.1} parent=5 // pred_check_branch
        %564 = sbr.rel (%p561) target = $region12
      $region11: #{tpu_custom_call.1} parent=5 // pred_region
        %s565 = ssub.s32 %s44, 1
        // Predicated region
        $region13: #{tpu_custom_call.1} parent=11 // pred_check
          %p566 = pneg %p169
        $region14: #{tpu_custom_call.1} parent=11 // pred_check_branch
          %568 = sbr.rel (%p566) target = $region16
        $region15: #{tpu_custom_call.1} parent=11 // pred_region
          %570 = vsyncadd [#allocation9], 0
          %s571 = sshll.u32 %s4, 4
          %s572 = int_to_ptr.hbm [resolvable:$true] %s571
          %s573 = sshll.u32 [#allocation8], 4
          %s574 = int_to_ptr.vmem [resolvable:$true] %s573
          %579 = dma.hbm_to_vmem [thread:$0]  %s572, 384, %s574, [#allocation9], 128, 128, 8
        $region16: #{tpu_custom_call.1} parent=11 // pred_fallthru
          _
        // Predicated region
        $region17: #{tpu_custom_call.1} parent=11 // pred_check
          %p580 = pneg %p190
        $region18: #{tpu_custom_call.1} parent=11 // pred_check_branch
          %582 = sbr.rel (%p580) target = $region20
        $region19: #{tpu_custom_call.1} parent=11 // pred_region
          _
        $region20: #{tpu_custom_call.1} parent=11 // pred_fallthru
          _
        // Predicated region
        $region21: #{tpu_custom_call.1} parent=11 // pred_check
          %p583 = pneg %p211
        $region22: #{tpu_custom_call.1} parent=11 // pred_check_branch
          %585 = sbr.rel (%p583) target = $region24
        $region23: #{tpu_custom_call.1} parent=11 // pred_region
          _
        $region24: #{tpu_custom_call.1} parent=11 // pred_fallthru
          _
        // Predicated region
        $region25: #{tpu_custom_call.1} parent=11 // pred_check
          %p586 = pneg %p232
        $region26: #{tpu_custom_call.1} parent=11 // pred_check_branch
          %588 = sbr.rel (%p586) target = $region28
        $region27: #{tpu_custom_call.1} parent=11 // pred_region
          _
        $region28: #{tpu_custom_call.1} parent=11 // pred_fallthru
          _
        // Predicated region
        $region29: #{tpu_custom_call.1} parent=11 // pred_check
          %p589 = pneg %p253
        $region30: #{tpu_custom_call.1} parent=11 // pred_check_branch
          %591 = sbr.rel (%p589) target = $region32
        $region31: #{tpu_custom_call.1} parent=11 // pred_region
          _
        $region32: #{tpu_custom_call.1} parent=11 // pred_fallthru
          _
        // Predicated region
        $region33: #{tpu_custom_call.1} parent=11 // pred_check
          %p592 = pneg %p274
        $region34: #{tpu_custom_call.1} parent=11 // pred_check_branch
          %594 = sbr.rel (%p592) target = $region36
        $region35: #{tpu_custom_call.1} parent=11 // pred_region
          _
        $region36: #{tpu_custom_call.1} parent=11 // pred_fallthru
          _
        // Predicated region
        $region37: #{tpu_custom_call.1} parent=11 // pred_check
          %p595 = pneg %p295
        $region38: #{tpu_custom_call.1} parent=11 // pred_check_branch
          %597 = sbr.rel (%p595) target = $region40
        $region39: #{tpu_custom_call.1} parent=11 // pred_region
          _
        $region40: #{tpu_custom_call.1} parent=11 // pred_fallthru
          _
        // Predicated region
        $region41: #{tpu_custom_call.1} parent=11 // pred_check
          %p598 = pneg %p316
        $region42: #{tpu_custom_call.1} parent=11 // pred_check_branch
          %600 = sbr.rel (%p598) target = $region44
        $region43: #{tpu_custom_call.1} parent=11 // pred_region
          _
        $region44: #{tpu_custom_call.1} parent=11 // pred_fallthru
          _
        // Predicated region
        $region45: #{tpu_custom_call.1} parent=11 // pred_check
          %p601 = pneg %p337
        $region46: #{tpu_custom_call.1} parent=11 // pred_check_branch
          %603 = sbr.rel (%p601) target = $region48
        $region47: #{tpu_custom_call.1} parent=11 // pred_region
          _
        $region48: #{tpu_custom_call.1} parent=11 // pred_fallthru
          _
        // Predicated region
        $region49: #{tpu_custom_call.1} parent=11 // pred_check
          %p604 = pneg %p358
        $region50: #{tpu_custom_call.1} parent=11 // pred_check_branch
          %606 = sbr.rel (%p604) target = $region52
        $region51: #{tpu_custom_call.1} parent=11 // pred_region
          _
        $region52: #{tpu_custom_call.1} parent=11 // pred_fallthru
          _
        // Predicated region
        $region53: #{tpu_custom_call.1} parent=11 // pred_check
          %p607 = pneg %p379
        $region54: #{tpu_custom_call.1} parent=11 // pred_check_branch
          %609 = sbr.rel (%p607) target = $region56
        $region55: #{tpu_custom_call.1} parent=11 // pred_region
          %611 = vsyncadd [#allocation9], 0
          %s612 = sshll.u32 %s14, 4
          %s613 = int_to_ptr.hbm [resolvable:$true] %s612
          %s614 = sshll.u32 [#allocation10], 4
          %s615 = int_to_ptr.vmem [resolvable:$true] %s614
          %620 = dma.hbm_to_vmem [thread:$0]  %s613, 512, %s615, [#allocation9], 128, 128, 8
        $region56: #{tpu_custom_call.1} parent=11 // pred_fallthru
          _
        // Predicated region
        $region57: #{tpu_custom_call.1} parent=11 // pred_check
          %p621 = pneg %p400
        $region58: #{tpu_custom_call.1} parent=11 // pred_check_branch
          %623 = sbr.rel (%p621) target = $region60
        $region59: #{tpu_custom_call.1} parent=11 // pred_region
          _
        $region60: #{tpu_custom_call.1} parent=11 // pred_fallthru
          _
        // Predicated region
        $region61: #{tpu_custom_call.1} parent=11 // pred_check
          %p624 = pneg %p421
        $region62: #{tpu_custom_call.1} parent=11 // pred_check_branch
          %626 = sbr.rel (%p624) target = $region64
        $region63: #{tpu_custom_call.1} parent=11 // pred_region
          _
        $region64: #{tpu_custom_call.1} parent=11 // pred_fallthru
          _
      $region12: #{tpu_custom_call.1} parent=5 // pred_fallthru
        _
      %p627 = scmp.lt.s32.totalorder %s44, 2
      // Predicated region
      $region65: #{tpu_custom_call.1} parent=5 // pred_check
        %p628 = pneg %p627
      $region66: #{tpu_custom_call.1} parent=5 // pred_check_branch
        %630 = sbr.rel (%p628) target = $region68
      $region67: #{tpu_custom_call.1} parent=5 // pred_region
        // Predicated region
        $region69: #{tpu_custom_call.1} parent=67 // pred_check
          %p631 = pneg %p64
        $region70: #{tpu_custom_call.1} parent=67 // pred_check_branch
          %633 = sbr.rel (%p631) target = $region72
        $region71: #{tpu_custom_call.1} parent=67 // pred_region
          %p634 = scmp.lt.s32.totalorder %s44, 1
          %s635 = scalar_select %p634, %s44, 1
          %s636 = smul.addr %s635, 8
          %s637 = scalar_lea.vmem %s0, %s636
        $region72: #{tpu_custom_call.1} parent=67 // pred_fallthru
          _
        // Predicated region
        $region73: #{tpu_custom_call.1} parent=67 // pred_check
          %p638 = pneg %p90
        $region74: #{tpu_custom_call.1} parent=67 // pred_check_branch
          %640 = sbr.rel (%p638) target = $region76
        $region75: #{tpu_custom_call.1} parent=67 // pred_region
          %s641 = sand.u32 %s80, 1
          %s642 = scalar_lea.sflag [#allocation3], %s641
          %s643 = sand.u32 %s80, 1
          %s644 = smul.addr %s643, 8
          %s645 = scalar_lea.vmem [#allocation2], %s644
          %647 = vsyncadd %s642, 0
          %s648 = smul.addr %s44, 8
          %s649 = scalar_lea.hbm %s1, %s648
          %s651 = sshll.u32 %s649, 4
          %s652 = int_to_ptr.hbm [resolvable:$true] %s651
          %s653 = sshll.u32 %s645, 4
          %s654 = int_to_ptr.vmem [resolvable:$true] %s653
          %656 = dma.hbm_to_vmem [thread:$0]  %s652, 128, %s654, %s642
        $region76: #{tpu_custom_call.1} parent=67 // pred_fallthru
          _
        // Predicated region
        $region77: #{tpu_custom_call.1} parent=67 // pred_check
          %p657 = pneg %p116
        $region78: #{tpu_custom_call.1} parent=67 // pred_check_branch
          %659 = sbr.rel (%p657) target = $region80
        $region79: #{tpu_custom_call.1} parent=67 // pred_region
          %s660 = sand.u32 %s44, 1
          %s661 = scalar_lea.sflag [#allocation6], %s660
          %s662 = sand.u32 %s106, 1
          %s663 = smul.addr %s662, 8
          %s664 = scalar_lea.vmem [#allocation5], %s663
          %666 = vsyncadd %s661, 0
          %s667 = smul.addr %s44, 8
          %s668 = scalar_lea.hbm %s2, %s667
          %s670 = sshll.u32 %s668, 4
          %s671 = int_to_ptr.hbm [resolvable:$true] %s670
          %s672 = sshll.u32 %s664, 4
          %s673 = int_to_ptr.vmem [resolvable:$true] %s672
          %675 = dma.hbm_to_vmem [thread:$0]  %s671, 128, %s673, %s661
        $region80: #{tpu_custom_call.1} parent=67 // pred_fallthru
          _
        // Predicated region
        $region81: #{tpu_custom_call.1} parent=67 // pred_check
          %p676 = pneg %p142
        $region82: #{tpu_custom_call.1} parent=67 // pred_check_branch
          %678 = sbr.rel (%p676) target = $region84
        $region83: #{tpu_custom_call.1} parent=67 // pred_region
          %s679 = sand.u32 %s44, 1
          %s680 = scalar_lea.sflag [#allocation6], %s679
          %s681 = sand.u32 %s132, 1
          %s682 = smul.addr %s681, 8
          %s683 = scalar_lea.vmem [#allocation7], %s682
          %685 = vsyncadd %s680, 0
          %s686 = smul.addr %s44, 8
          %s687 = scalar_lea.hbm %s3, %s686
          %s689 = sshll.u32 %s687, 4
          %s690 = int_to_ptr.hbm [resolvable:$true] %s689
          %s691 = sshll.u32 %s683, 4
          %s692 = int_to_ptr.vmem [resolvable:$true] %s691
          %694 = dma.hbm_to_vmem [thread:$0]  %s690, 128, %s692, %s680
        $region84: #{tpu_custom_call.1} parent=67 // pred_fallthru
          _
      $region68: #{tpu_custom_call.1} parent=5 // pred_fallthru
        _
      %p695 = scmp.le.s32.totalorder 1, %s44
      %p696 = scmp.lt.s32.totalorder %s44, 3
      %p697 = pnand %p695, %p696
      %p698 = pneg %p697
      // Predicated region
      $region85: #{tpu_custom_call.1} parent=5 // pred_check
        _
      $region86: #{tpu_custom_call.1} parent=5 // pred_check_branch
        %700 = sbr.rel (%p697) target = $region88
      $region87: #{tpu_custom_call.1} parent=5 // pred_region
        %s701 = ssub.s32 %s44, 1
        %s702 = sand.u32 %s83, 1
        %s703 = scalar_lea.sflag [#allocation3], %s702
        %s704 = sand.u32 %s83, 1
        %s705 = smul.addr %s704, 8
        %s706 = scalar_lea.vmem [#allocation2], %s705
        // Predicated region
        $region89: #{tpu_custom_call.1} parent=87 // pred_check
          %p707 = pneg %p96
        $region90: #{tpu_custom_call.1} parent=87 // pred_check_branch
          %709 = sbr.rel (%p707) target = $region92
        $region91: #{tpu_custom_call.1} parent=87 // pred_region
          %711 = dma.done %s703, 128
        $region92: #{tpu_custom_call.1} parent=87 // pred_fallthru
          _
        %s712 = sand.u32 %s49, 1
        %s713 = scalar_lea.sflag [#allocation6], %s712
        %s714 = sand.u32 %s109, 1
        %s715 = smul.addr %s714, 8
        %s716 = scalar_lea.vmem [#allocation5], %s715
        // Predicated region
        $region93: #{tpu_custom_call.1} parent=87 // pred_check
          %p717 = pneg %p122
        $region94: #{tpu_custom_call.1} parent=87 // pred_check_branch
          %719 = sbr.rel (%p717) target = $region96
        $region95: #{tpu_custom_call.1} parent=87 // pred_region
          %721 = dma.done %s713, 128
        $region96: #{tpu_custom_call.1} parent=87 // pred_fallthru
          _
        %s722 = sand.u32 %s49, 1
        %s723 = scalar_lea.sflag [#allocation6], %s722
        %s724 = sand.u32 %s135, 1
        %s725 = smul.addr %s724, 8
        %s726 = scalar_lea.vmem [#allocation7], %s725
        // Predicated region
        $region97: #{tpu_custom_call.1} parent=87 // pred_check
          %p727 = pneg %p148
        $region98: #{tpu_custom_call.1} parent=87 // pred_check_branch
          %729 = sbr.rel (%p727) target = $region100
        $region99: #{tpu_custom_call.1} parent=87 // pred_region
          %731 = dma.done %s723, 128
        $region100: #{tpu_custom_call.1} parent=87 // pred_fallthru
          _
        // Predicated region
        $region101: #{tpu_custom_call.1} parent=87 // pred_check
          %p732 = pneg %p169
        $region102: #{tpu_custom_call.1} parent=87 // pred_check_branch
          %734 = sbr.rel (%p732) target = $region104
        $region103: #{tpu_custom_call.1} parent=87 // pred_region
          %736 = dma.done [#allocation9], 384
        $region104: #{tpu_custom_call.1} parent=87 // pred_fallthru
          _
        // Predicated region
        $region105: #{tpu_custom_call.1} parent=87 // pred_check
          %p737 = pneg %p379
        $region106: #{tpu_custom_call.1} parent=87 // pred_check_branch
          %739 = sbr.rel (%p737) target = $region108
        $region107: #{tpu_custom_call.1} parent=87 // pred_region
          %741 = dma.done [#allocation9], 512
        $region108: #{tpu_custom_call.1} parent=87 // pred_fallthru
          _
        %p742 = scmp.lt.s32.totalorder %s49, 1
        %s743 = scalar_select %p742, %s49, 1
        %s744 = smul.addr %s743, 8
        %s745 = scalar_lea.vmem %s0, %s744
        %p746 = pneg %p70
        %p747 = pneg %p67
        %s748 = sand.u32 %s83, 1
        %s749 = scalar_lea.sflag [#allocation3], %s748
        %s750 = sand.u32 %s83, 1
        %s751 = smul.addr %s750, 8
        %s752 = scalar_lea.vmem [#allocation2], %s751
        %p753 = pneg %p96
        %p754 = pneg %p93
        %s755 = sand.u32 %s49, 1
        %s756 = scalar_lea.sflag [#allocation6], %s755
        %s757 = sand.u32 %s109, 1
        %s758 = smul.addr %s757, 8
        %s759 = scalar_lea.vmem [#allocation5], %s758
        %p760 = pneg %p122
        %p761 = pneg %p119
        %s762 = sand.u32 %s49, 1
        %s763 = scalar_lea.sflag [#allocation6], %s762
        %s764 = sand.u32 %s135, 1
        %s765 = smul.addr %s764, 8
        %s766 = scalar_lea.vmem [#allocation7], %s765
        %p767 = pneg %p148
        %p768 = pneg %p145
        %p769 = pneg %p169
        %p770 = pneg %p166
        %p771 = pneg %p190
        %p772 = pneg %p187
        %p773 = pneg %p211
        %p774 = pneg %p208
        %p775 = pneg %p232
        %p776 = pneg %p229
        %p777 = pneg %p253
        %p778 = pneg %p250
        %p779 = pneg %p274
        %p780 = pneg %p271
        %p781 = pneg %p295
        %p782 = pneg %p292
        %p783 = pneg %p316
        %p784 = pneg %p313
        %p785 = pneg %p337
        %p786 = pneg %p334
        %p787 = pneg %p358
        %p788 = pneg %p355
        %p789 = pneg %p379
        %p790 = pneg %p376
        %p791 = pneg %p400
        %p792 = pneg %p397
        %p793 = pneg %p421
        %p794 = pneg %p418
        %p795 = pneg %p447
        %p796 = pneg %p444
        %s797 = sand.u32 %s434, 1
        %s798 = scalar_lea.sflag [#allocation4], %s797
        %s799 = sand.u32 %s434, 1
        %s800 = smul.addr %s799, 8
        %s801 = scalar_lea.vmem [#allocation11], %s800
        %p802 = pneg %p473
        %p803 = pneg %p470
        %s804 = sand.u32 %s49, 1
        %s805 = scalar_lea.sflag [#allocation13], %s804
        %s806 = sand.u32 %s460, 1
        %s807 = smul.addr %s806, 8
        %s808 = scalar_lea.vmem [#allocation12], %s807
        %p809 = pneg %p499
        %p810 = pneg %p496
        %s811 = sand.u32 %s49, 1
        %s812 = scalar_lea.sflag [#allocation13], %s811
        %s813 = sand.u32 %s486, 1
        %s814 = smul.addr %s813, 8
        %s815 = scalar_lea.vmem [#allocation14], %s814
        %p816 = pneg %p525
        %p817 = pneg %p522
        %s818 = sand.u32 %s49, 1
        %s819 = scalar_lea.sflag [#allocation16], %s818
        %s820 = sand.u32 %s512, 1
        %s821 = smul.addr %s820, 8
        %s822 = scalar_lea.vmem [#allocation15], %s821
        %p823 = pneg %p551
        %p824 = pneg %p548
        %s825 = sand.u32 %s49, 1
        %s826 = scalar_lea.sflag [#allocation16], %s825
        %s827 = sand.u32 %s538, 1
        %s828 = smul.addr %s827, 8
        %s829 = scalar_lea.vmem [#allocation17], %s828
        %p830 = scmp.lt.s32.totalorder %s49, 1
        %s831 = scalar_select %p830, %s49, 1
        %s832 = smul.addr %s831, 8
        %s833 = scalar_lea.vmem %s0, %s832
        %v834 = vld [vmem:[%s833] sm:$0xff]
        %v835 = vld [vmem:[#allocation8] sm:$0xff]
        %v836 = vld [vmem:[#allocation8 + $0x8] sm:$0xff]
        %v837 = vld [vmem:[#allocation8 + $0x10] sm:$0xff]
        %v838 = vld [vmem:[%s5] sm:$0x1]
        %v840 = vperm.slane %v838, 0
        %vm842 = vcmask 195584
        %v844 = vsel %vm842, %v834, 0
        %846 = vmatpush.msra.mxu0 0.0
        %847 = vmatpush.msra.mxu0 0.0
        %848 = vmatpush.msra.mxu0 0.0
        %849 = vmatpush.msra.mxu0 0.0
        %850 = vmatpush.msra.mxu0 0.0
        %851 = vmatpush.msra.mxu0 0.0
        %852 = vmatpush.msra.mxu0 0.0
        %853 = vmatpush.msra.mxu0 0.0
        %854 = vmatpush.msra.mxu0 0.0
        %855 = vmatpush.msra.mxu0 0.0
        %856 = vmatpush.msra.mxu0 0.0
        %857 = vmatpush.msra.mxu0 0.0
        %858 = vmatpush.msra.mxu0 0.0
        %859 = vmatpush.msra.mxu0 %v837
        %860 = vmatpush.msra.mxu0 %v836
        %861 = vmatpush.msra.mxu0 %v835
        %862 = vmatmul.f32.gmra.mxu0 %v844
        %v863 = vpop.f32.mrf.mxu0
        %v864 = vadd.f32 %v840, %v863
        %865 = vdwg.mxu0
        %v866 = vld [vmem:[%s706] sm:$0xff]
        %v867 = vld [vmem:[%s6] sm:$0xff]
        %v868 = vld [vmem:[%s6 + $0x8] sm:$0xff]
        %v869 = vld [vmem:[%s6 + $0x10] sm:$0xff]
        %v870 = vld [vmem:[%s6 + $0x18] sm:$0xff]
        %v871 = vld [vmem:[%s6 + $0x20] sm:$0xff]
        %v872 = vld [vmem:[%s6 + $0x28] sm:$0xff]
        %v873 = vld [vmem:[%s7] sm:$0x1]
        %v875 = vperm.slane %v873, 0
        %vm877 = vcmask 392192
        %v879 = vsel %vm877, %v866, 0
        %881 = vmatpush.msra.mxu0 0.0
        %882 = vmatpush.msra.mxu0 0.0
        %883 = vmatpush.msra.mxu0 0.0
        %884 = vmatpush.msra.mxu0 0.0
        %885 = vmatpush.msra.mxu0 0.0
        %886 = vmatpush.msra.mxu0 0.0
        %887 = vmatpush.msra.mxu0 0.0
        %888 = vmatpush.msra.mxu0 0.0
        %889 = vmatpush.msra.mxu0 0.0
        %890 = vmatpush.msra.mxu0 0.0
        %891 = vmatpush.msra.mxu0 %v872
        %892 = vmatpush.msra.mxu0 %v871
        %893 = vmatpush.msra.mxu0 %v870
        %894 = vmatpush.msra.mxu0 %v869
        %895 = vmatpush.msra.mxu0 %v868
        %896 = vmatpush.msra.mxu0 %v867
        %897 = vmatmul.f32.gmra.mxu0 %v879
        %v898 = vpop.f32.mrf.mxu0
        %v899 = vadd.f32 %v875, %v898
        %900 = vdwg.mxu0
        %vm901 = vcmask 261120
        %902 = vst.msk [vmem:[%s801] sm:$0xff] %vm901, %v864
        %903 = vst.msk [vmem:[%s808] sm:$0xff] %vm901, %v899
        %v904 = vld [vmem:[%s716] sm:$0xff]
        %v905 = vld [vmem:[%s726] sm:$0xff]
        %v906 = vld [vmem:[%s8] sm:$0xff]
        %v907 = vld [vmem:[%s8 + $0x8] sm:$0xff]
        %v908 = vld [vmem:[%s8 + $0x10] sm:$0xff]
        %v909 = vld [vmem:[%s8 + $0x18] sm:$0xff]
        %v910 = vld [vmem:[%s9] sm:$0x1]
        %v911 = vld [vmem:[%s10] sm:$0x1]
        %v913 = vperm.slane %v910, 0
        %v916 = vsel %vm901, %v864, 0
        %918 = vmatpush.msra.mxu0 0.0
        %919 = vmatpush.msra.mxu0 0.0
        %920 = vmatpush.msra.mxu0 0.0
        %921 = vmatpush.msra.mxu0 0.0
        %922 = vmatpush.msra.mxu0 0.0
        %923 = vmatpush.msra.mxu0 0.0
        %924 = vmatpush.msra.mxu0 0.0
        %925 = vmatpush.msra.mxu0 0.0
        %926 = vmatpush.msra.mxu0 0.0
        %927 = vmatpush.msra.mxu0 0.0
        %928 = vmatpush.msra.mxu0 0.0
        %929 = vmatpush.msra.mxu0 0.0
        %930 = vmatpush.msra.mxu0 %v909
        %931 = vmatpush.msra.mxu0 %v908
        %932 = vmatpush.msra.mxu0 %v907
        %933 = vmatpush.msra.mxu0 %v906
        %934 = vmatmul.f32.gmra.mxu0 %v916
        %v935 = vpop.f32.mrf.mxu0
        %v936 = vadd.f32 %v913, %v935
        %937 = vdwg.mxu0
        %v938 = vtanh.pop %v936
        %v940 = vsel %vm901, %v905, 0
        %942 = vmatpush.msra.mxu0 0.0
        %943 = vmatpush.msra.mxu0 0.0
        %944 = vmatpush.msra.mxu0 0.0
        %945 = vmatpush.msra.mxu0 0.0
        %946 = vmatpush.msra.mxu0 0.0
        %947 = vmatpush.msra.mxu0 0.0
        %948 = vmatpush.msra.mxu0 0.0
        %949 = vmatpush.msra.mxu0 0.0
        %950 = vmatpush.msra.mxu0 0.0
        %951 = vmatpush.msra.mxu0 0.0
        %952 = vmatpush.msra.mxu0 0.0
        %953 = vmatpush.msra.mxu0 0.0
        %954 = vmatpush.msra.mxu0 %v909
        %955 = vmatpush.msra.mxu0 %v908
        %956 = vmatpush.msra.mxu0 %v907
        %957 = vmatpush.msra.mxu0 %v906
        %958 = vmatmul.f32.gmra.mxu0 %v940
        %v959 = vpop.f32.mrf.mxu0
        %v960 = vadd.f32 %v913, %v959
        %961 = vdwg.mxu0
        %v962 = vtanh.pop %v960
        %v964 = vperm.slane %v911, 0
        %v966 = vmul.f32 %v938, %v964
        %v967 = vsel %vm901, %v966, 0.0
        %968 = vadd.xlane.f32.xlu0 %v967
        %v969 = vpop.xlane.xlu0 %968
        %v970 = vmul.f32 %v962, %v964
        %v971 = vsel %vm901, %v970, 0.0
        %972 = vadd.xlane.f32.xlu0 %v971
        %v973 = vpop.xlane.xlu0 %972
        %v974 = vsub.f32 %v969, %v973
        %v975 = vxor.u32 %v974, 2147483648
        %v976 = vmul.f32 %v975, 1.442695
        %v977 = vpow.pop %v976
        %v978 = vadd.f32 %v977, 1.0
        %v979 = vrcp.pop %v978
        %v980 = vmul.f32 %v978, %v979
        %v981 = vsub.f32 1.0, %v980
        %v982 = vmul.f32 %v979, %v981
        %v983 = vadd.f32 %v979, %v982
        %vm984 = vweird.f32 %v978
        %vm985 = vweird.f32 %v979
        %vm986 = vmor %vm984, %vm985
        %v987 = vsel %vm986, %v979, %v983
        %v988 = vand.u32 2147483647, %v978
        %vm989 = vcmp.eq.f32.partialorder %v988, 8.507059e+37
        %v990 = vand.u32 %v978, 2147483648
        %v991 = vor.u32 1.1754944e-38, %v990
        %v992 = vsel %vm989, %v991, %v987
        %v993 = vmul.f32 1.0, %v992
        %v994 = vsub.f32 %v864, %v905
        %v995 = vmul.f32 %v993, %v994
        %v996 = vadd.f32 %v905, %v995
        %v997 = vld [vmem:[%s11] sm:$0xff]
        %v998 = vld [vmem:[%s11 + $0x8] sm:$0xff]
        %v999 = vld [vmem:[%s11 + $0x10] sm:$0xff]
        %v1000 = vld [vmem:[%s11 + $0x18] sm:$0xff]
        %v1001 = vld [vmem:[%s12] sm:$0x1]
        %v1002 = vld [vmem:[%s13] sm:$0x1]
        %v1004 = vperm.slane %v1001, 0
        %v1007 = vsel %vm901, %v899, 0
        %1009 = vmatpush.msra.mxu0 0.0
        %1010 = vmatpush.msra.mxu0 0.0
        %1011 = vmatpush.msra.mxu0 0.0
        %1012 = vmatpush.msra.mxu0 0.0
        %1013 = vmatpush.msra.mxu0 0.0
        %1014 = vmatpush.msra.mxu0 0.0
        %1015 = vmatpush.msra.mxu0 0.0
        %1016 = vmatpush.msra.mxu0 0.0
        %1017 = vmatpush.msra.mxu0 0.0
        %1018 = vmatpush.msra.mxu0 0.0
        %1019 = vmatpush.msra.mxu0 0.0
        %1020 = vmatpush.msra.mxu0 0.0
        %1021 = vmatpush.msra.mxu0 %v1000
        %1022 = vmatpush.msra.mxu0 %v999
        %1023 = vmatpush.msra.mxu0 %v998
        %1024 = vmatpush.msra.mxu0 %v997
        %1025 = vmatmul.f32.gmra.mxu0 %v1007
        %v1026 = vpop.f32.mrf.mxu0
        %v1027 = vadd.f32 %v1004, %v1026
        %1028 = vdwg.mxu0
        %v1029 = vtanh.pop %v1027
        %v1031 = vsel %vm901, %v904, 0
        %1033 = vmatpush.msra.mxu0 0.0
        %1034 = vmatpush.msra.mxu0 0.0
        %1035 = vmatpush.msra.mxu0 0.0
        %1036 = vmatpush.msra.mxu0 0.0
        %1037 = vmatpush.msra.mxu0 0.0
        %1038 = vmatpush.msra.mxu0 0.0
        %1039 = vmatpush.msra.mxu0 0.0
        %1040 = vmatpush.msra.mxu0 0.0
        %1041 = vmatpush.msra.mxu0 0.0
        %1042 = vmatpush.msra.mxu0 0.0
        %1043 = vmatpush.msra.mxu0 0.0
        %1044 = vmatpush.msra.mxu0 0.0
        %1045 = vmatpush.msra.mxu0 %v1000
        %1046 = vmatpush.msra.mxu0 %v999
        %1047 = vmatpush.msra.mxu0 %v998
        %1048 = vmatpush.msra.mxu0 %v997
        %1049 = vmatmul.f32.gmra.mxu0 %v1031
        %v1050 = vpop.f32.mrf.mxu0
        %v1051 = vadd.f32 %v1004, %v1050
        %1052 = vdwg.mxu0
        %v1053 = vtanh.pop %v1051
        %v1055 = vperm.slane %v1002, 0
        %v1057 = vmul.f32 %v1029, %v1055
        %v1058 = vsel %vm901, %v1057, 0.0
        %1059 = vadd.xlane.f32.xlu0 %v1058
        %v1060 = vpop.xlane.xlu0 %1059
        %v1061 = vmul.f32 %v1053, %v1055
        %v1062 = vsel %vm901, %v1061, 0.0
        %1063 = vadd.xlane.f32.xlu0 %v1062
        %v1064 = vpop.xlane.xlu0 %1063
        %v1065 = vsub.f32 %v1060, %v1064
        %v1066 = vxor.u32 %v1065, 2147483648
        %v1067 = vmul.f32 %v1066, 1.442695
        %v1068 = vpow.pop %v1067
        %v1069 = vadd.f32 %v1068, 1.0
        %v1070 = vrcp.pop %v1069
        %v1071 = vmul.f32 %v1069, %v1070
        %v1072 = vsub.f32 1.0, %v1071
        %v1073 = vmul.f32 %v1070, %v1072
        %v1074 = vadd.f32 %v1070, %v1073
        %vm1075 = vweird.f32 %v1069
        %vm1076 = vweird.f32 %v1070
        %vm1077 = vmor %vm1075, %vm1076
        %v1078 = vsel %vm1077, %v1070, %v1074
        %v1079 = vand.u32 2147483647, %v1069
        %vm1080 = vcmp.eq.f32.partialorder %v1079, 8.507059e+37
        %v1081 = vand.u32 %v1069, 2147483648
        %v1082 = vor.u32 1.1754944e-38, %v1081
        %v1083 = vsel %vm1080, %v1082, %v1078
        %v1084 = vmul.f32 1.0, %v1083
        %v1085 = vsub.f32 %v899, %v904
        %v1086 = vmul.f32 %v1084, %v1085
        %v1087 = vadd.f32 %v904, %v1086
        %v1088 = vld [vmem:[#allocation10] sm:$0xff]
        %v1089 = vld [vmem:[#allocation10 + $0x8] sm:$0xff]
        %v1090 = vld [vmem:[#allocation10 + $0x10] sm:$0xff]
        %v1091 = vld [vmem:[#allocation10 + $0x18] sm:$0xff]
        %v1092 = vld [vmem:[%s15] sm:$0x1]
        %v1093 = vld [vmem:[%s16] sm:$0x1]
        %v1095 = vperm.slane %v1092, 0
        %v1098 = vsel %vm901, %v996, 0
        %1100 = vmatpush.msra.mxu0 0.0
        %1101 = vmatpush.msra.mxu0 0.0
        %1102 = vmatpush.msra.mxu0 0.0
        %1103 = vmatpush.msra.mxu0 0.0
        %1104 = vmatpush.msra.mxu0 0.0
        %1105 = vmatpush.msra.mxu0 0.0
        %1106 = vmatpush.msra.mxu0 0.0
        %1107 = vmatpush.msra.mxu0 0.0
        %1108 = vmatpush.msra.mxu0 0.0
        %1109 = vmatpush.msra.mxu0 0.0
        %1110 = vmatpush.msra.mxu0 0.0
        %1111 = vmatpush.msra.mxu0 0.0
        %1112 = vmatpush.msra.mxu0 %v1091
        %1113 = vmatpush.msra.mxu0 %v1090
        %1114 = vmatpush.msra.mxu0 %v1089
        %1115 = vmatpush.msra.mxu0 %v1088
        %1116 = vmatmul.f32.gmra.mxu0 %v1098
        %v1117 = vpop.f32.mrf.mxu0
        %v1118 = vadd.f32 %v1095, %v1117
        %1119 = vdwg.mxu0
        %v1120 = vtanh.pop %v1118
        %v1122 = vsel %vm901, %v1087, 0
        %1124 = vmatpush.msra.mxu0 0.0
        %1125 = vmatpush.msra.mxu0 0.0
        %1126 = vmatpush.msra.mxu0 0.0
        %1127 = vmatpush.msra.mxu0 0.0
        %1128 = vmatpush.msra.mxu0 0.0
        %1129 = vmatpush.msra.mxu0 0.0
        %1130 = vmatpush.msra.mxu0 0.0
        %1131 = vmatpush.msra.mxu0 0.0
        %1132 = vmatpush.msra.mxu0 0.0
        %1133 = vmatpush.msra.mxu0 0.0
        %1134 = vmatpush.msra.mxu0 0.0
        %1135 = vmatpush.msra.mxu0 0.0
        %1136 = vmatpush.msra.mxu0 %v1091
        %1137 = vmatpush.msra.mxu0 %v1090
        %1138 = vmatpush.msra.mxu0 %v1089
        %1139 = vmatpush.msra.mxu0 %v1088
        %1140 = vmatmul.f32.gmra.mxu0 %v1122
        %v1141 = vpop.f32.mrf.mxu0
        %v1142 = vadd.f32 %v1095, %v1141
        %1143 = vdwg.mxu0
        %v1144 = vtanh.pop %v1142
        %v1146 = vperm.slane %v1093, 0
        %v1148 = vmul.f32 %v1120, %v1146
        %v1149 = vsel %vm901, %v1148, 0.0
        %1150 = vadd.xlane.f32.xlu0 %v1149
        %v1151 = vpop.xlane.xlu0 %1150
        %v1152 = vmul.f32 %v1144, %v1146
        %v1153 = vsel %vm901, %v1152, 0.0
        %1154 = vadd.xlane.f32.xlu0 %v1153
        %v1155 = vpop.xlane.xlu0 %1154
        %v1156 = vsub.f32 %v1151, %v1155
        %v1157 = vxor.u32 %v1156, 2147483648
        %v1158 = vmul.f32 %v1157, 1.442695
        %v1159 = vpow.pop %v1158
        %v1160 = vadd.f32 %v1159, 1.0
        %v1161 = vrcp.pop %v1160
        %v1162 = vmul.f32 %v1160, %v1161
        %v1163 = vsub.f32 1.0, %v1162
        %v1164 = vmul.f32 %v1161, %v1163
        %v1165 = vadd.f32 %v1161, %v1164
        %vm1166 = vweird.f32 %v1160
        %vm1167 = vweird.f32 %v1161
        %vm1168 = vmor %vm1166, %vm1167
        %v1169 = vsel %vm1168, %v1161, %v1165
        %v1170 = vand.u32 2147483647, %v1160
        %vm1171 = vcmp.eq.f32.partialorder %v1170, 8.507059e+37
        %v1172 = vand.u32 %v1160, 2147483648
        %v1173 = vor.u32 1.1754944e-38, %v1172
        %v1174 = vsel %vm1171, %v1173, %v1169
        %v1175 = vmul.f32 1.0, %v1174
        %v1176 = vsub.f32 %v996, %v1087
        %v1177 = vmul.f32 %v1175, %v1176
        %v1178 = vadd.f32 %v1087, %v1177
        %1179 = vst.msk [vmem:[%s815] sm:$0xff] %vm901, %v996
        %1180 = vst.msk [vmem:[%s822] sm:$0xff] %vm901, %v1087
        %1181 = vst.msk [vmem:[%s829] sm:$0xff] %vm901, %v1178
        %s1182 = sand.u32 %s434, 1
        %s1183 = scalar_lea.sflag [#allocation4], %s1182
        %s1184 = sand.u32 %s434, 1
        %s1185 = smul.addr %s1184, 8
        %s1186 = scalar_lea.vmem [#allocation11], %s1185
        %s1187 = sand.u32 %s49, 1
        %s1188 = scalar_lea.sflag [#allocation13], %s1187
        %s1189 = sand.u32 %s460, 1
        %s1190 = smul.addr %s1189, 8
        %s1191 = scalar_lea.vmem [#allocation12], %s1190
        %s1192 = sand.u32 %s49, 1
        %s1193 = scalar_lea.sflag [#allocation13], %s1192
        %s1194 = sand.u32 %s486, 1
        %s1195 = smul.addr %s1194, 8
        %s1196 = scalar_lea.vmem [#allocation14], %s1195
        %s1197 = sand.u32 %s49, 1
        %s1198 = scalar_lea.sflag [#allocation16], %s1197
        %s1199 = sand.u32 %s512, 1
        %s1200 = smul.addr %s1199, 8
        %s1201 = scalar_lea.vmem [#allocation15], %s1200
        %s1202 = sand.u32 %s49, 1
        %s1203 = scalar_lea.sflag [#allocation16], %s1202
        %s1204 = sand.u32 %s538, 1
        %s1205 = smul.addr %s1204, 8
        %s1206 = scalar_lea.vmem [#allocation17], %s1205
        // Predicated region
        $region109: #{tpu_custom_call.1} parent=87 // pred_check
          %p1207 = pneg %p444
        $region110: #{tpu_custom_call.1} parent=87 // pred_check_branch
          %1209 = sbr.rel (%p1207) target = $region112
        $region111: #{tpu_custom_call.1} parent=87 // pred_region
          %1211 = vsyncadd %s1183, 0
          %s1212 = smul.addr %s49, 8
          %s1213 = scalar_lea.hbm %s17, %s1212
          %s1215 = sshll.u32 %s1186, 4
          %s1216 = int_to_ptr.vmem [resolvable:$true] %s1215
          %s1217 = sshll.u32 %s1213, 4
          %s1218 = int_to_ptr.hbm [resolvable:$true] %s1217
          %1220 = dma.vmem_to_hbm [thread:$0]  %s1216, 128, %s1218, %s1183
        $region112: #{tpu_custom_call.1} parent=87 // pred_fallthru
          _
        // Predicated region
        $region113: #{tpu_custom_call.1} parent=87 // pred_check
          %p1221 = pneg %p470
        $region114: #{tpu_custom_call.1} parent=87 // pred_check_branch
          %1223 = sbr.rel (%p1221) target = $region116
        $region115: #{tpu_custom_call.1} parent=87 // pred_region
          %1225 = vsyncadd %s1188, 0
          %s1226 = smul.addr %s49, 8
          %s1227 = scalar_lea.hbm %s18, %s1226
          %s1229 = sshll.u32 %s1191, 4
          %s1230 = int_to_ptr.vmem [resolvable:$true] %s1229
          %s1231 = sshll.u32 %s1227, 4
          %s1232 = int_to_ptr.hbm [resolvable:$true] %s1231
          %1234 = dma.vmem_to_hbm [thread:$0]  %s1230, 128, %s1232, %s1188
        $region116: #{tpu_custom_call.1} parent=87 // pred_fallthru
          _
        // Predicated region
        $region117: #{tpu_custom_call.1} parent=87 // pred_check
          %p1235 = pneg %p496
        $region118: #{tpu_custom_call.1} parent=87 // pred_check_branch
          %1237 = sbr.rel (%p1235) target = $region120
        $region119: #{tpu_custom_call.1} parent=87 // pred_region
          %1239 = vsyncadd %s1193, 0
          %s1240 = smul.addr %s49, 8
          %s1241 = scalar_lea.hbm %s19, %s1240
          %s1243 = sshll.u32 %s1196, 4
          %s1244 = int_to_ptr.vmem [resolvable:$true] %s1243
          %s1245 = sshll.u32 %s1241, 4
          %s1246 = int_to_ptr.hbm [resolvable:$true] %s1245
          %1248 = dma.vmem_to_hbm [thread:$0]  %s1244, 128, %s1246, %s1193
        $region120: #{tpu_custom_call.1} parent=87 // pred_fallthru
          _
        // Predicated region
        $region121: #{tpu_custom_call.1} parent=87 // pred_check
          %p1249 = pneg %p522
        $region122: #{tpu_custom_call.1} parent=87 // pred_check_branch
          %1251 = sbr.rel (%p1249) target = $region124
        $region123: #{tpu_custom_call.1} parent=87 // pred_region
          %1253 = vsyncadd %s1198, 0
          %s1254 = smul.addr %s49, 8
          %s1255 = scalar_lea.hbm %s20, %s1254
          %s1257 = sshll.u32 %s1201, 4
          %s1258 = int_to_ptr.vmem [resolvable:$true] %s1257
          %s1259 = sshll.u32 %s1255, 4
          %s1260 = int_to_ptr.hbm [resolvable:$true] %s1259
          %1262 = dma.vmem_to_hbm [thread:$0]  %s1258, 128, %s1260, %s1198
        $region124: #{tpu_custom_call.1} parent=87 // pred_fallthru
          _
        // Predicated region
        $region125: #{tpu_custom_call.1} parent=87 // pred_check
          %p1263 = pneg %p548
        $region126: #{tpu_custom_call.1} parent=87 // pred_check_branch
          %1265 = sbr.rel (%p1263) target = $region128
        $region127: #{tpu_custom_call.1} parent=87 // pred_region
          %1267 = vsyncadd %s1203, 0
          %s1268 = smul.addr %s49, 8
          %s1269 = scalar_lea.hbm %s21, %s1268
          %s1271 = sshll.u32 %s1206, 4
          %s1272 = int_to_ptr.vmem [resolvable:$true] %s1271
          %s1273 = sshll.u32 %s1269, 4
          %s1274 = int_to_ptr.hbm [resolvable:$true] %s1273
          %1276 = dma.vmem_to_hbm [thread:$0]  %s1272, 128, %s1274, %s1203
        $region128: #{tpu_custom_call.1} parent=87 // pred_fallthru
          _
      $region88: #{tpu_custom_call.1} parent=5 // pred_fallthru
        _
      %p1277 = scmp.le.s32.totalorder 2, %s44
      // Predicated region
      $region129: #{tpu_custom_call.1} parent=5 // pred_check
        %p1278 = pneg %p1277
      $region130: #{tpu_custom_call.1} parent=5 // pred_check_branch
        %1280 = sbr.rel (%p1278) target = $region132
      $region131: #{tpu_custom_call.1} parent=5 // pred_region
        %s1281 = ssub.s32 %s44, 2
        // Predicated region
        $region133: #{tpu_custom_call.1} parent=131 // pred_check
          %p1282 = pneg %p450
        $region134: #{tpu_custom_call.1} parent=131 // pred_check_branch
          %1284 = sbr.rel (%p1282) target = $region136
        $region135: #{tpu_custom_call.1} parent=131 // pred_region
          %s1285 = sand.u32 %s435, 1
          %s1286 = scalar_lea.sflag [#allocation4], %s1285
          %s1287 = sand.u32 %s435, 1
          %s1288 = smul.addr %s1287, 8
          %s1289 = scalar_lea.vmem [#allocation11], %s1288
          %1291 = dma.done %s1286, 128
        $region136: #{tpu_custom_call.1} parent=131 // pred_fallthru
          _
        // Predicated region
        $region137: #{tpu_custom_call.1} parent=131 // pred_check
          %p1292 = pneg %p476
        $region138: #{tpu_custom_call.1} parent=131 // pred_check_branch
          %1294 = sbr.rel (%p1292) target = $region140
        $region139: #{tpu_custom_call.1} parent=131 // pred_region
          %s1295 = sand.u32 %s50, 1
          %s1296 = scalar_lea.sflag [#allocation13], %s1295
          %s1297 = sand.u32 %s461, 1
          %s1298 = smul.addr %s1297, 8
          %s1299 = scalar_lea.vmem [#allocation12], %s1298
          %1301 = dma.done %s1296, 128
        $region140: #{tpu_custom_call.1} parent=131 // pred_fallthru
          _
        // Predicated region
        $region141: #{tpu_custom_call.1} parent=131 // pred_check
          %p1302 = pneg %p502
        $region142: #{tpu_custom_call.1} parent=131 // pred_check_branch
          %1304 = sbr.rel (%p1302) target = $region144
        $region143: #{tpu_custom_call.1} parent=131 // pred_region
          %s1305 = sand.u32 %s50, 1
          %s1306 = scalar_lea.sflag [#allocation13], %s1305
          %s1307 = sand.u32 %s487, 1
          %s1308 = smul.addr %s1307, 8
          %s1309 = scalar_lea.vmem [#allocation14], %s1308
          %1311 = dma.done %s1306, 128
        $region144: #{tpu_custom_call.1} parent=131 // pred_fallthru
          _
        // Predicated region
        $region145: #{tpu_custom_call.1} parent=131 // pred_check
          %p1312 = pneg %p528
        $region146: #{tpu_custom_call.1} parent=131 // pred_check_branch
          %1314 = sbr.rel (%p1312) target = $region148
        $region147: #{tpu_custom_call.1} parent=131 // pred_region
          %s1315 = sand.u32 %s50, 1
          %s1316 = scalar_lea.sflag [#allocation16], %s1315
          %s1317 = sand.u32 %s513, 1
          %s1318 = smul.addr %s1317, 8
          %s1319 = scalar_lea.vmem [#allocation15], %s1318
          %1321 = dma.done %s1316, 128
        $region148: #{tpu_custom_call.1} parent=131 // pred_fallthru
          _
        // Predicated region
        $region149: #{tpu_custom_call.1} parent=131 // pred_check
          %p1322 = pneg %p554
        $region150: #{tpu_custom_call.1} parent=131 // pred_check_branch
          %1324 = sbr.rel (%p1322) target = $region152
        $region151: #{tpu_custom_call.1} parent=131 // pred_region
          %s1325 = sand.u32 %s50, 1
          %s1326 = scalar_lea.sflag [#allocation16], %s1325
          %s1327 = sand.u32 %s539, 1
          %s1328 = smul.addr %s1327, 8
          %s1329 = scalar_lea.vmem [#allocation17], %s1328
          %1331 = dma.done %s1326, 128
        $region152: #{tpu_custom_call.1} parent=131 // pred_fallthru
          _
      $region132: #{tpu_custom_call.1} parent=5 // pred_fallthru
        _
    $region6: #{tpu_custom_call.1} parent=1 // loop_footer
      %s48 = sadd.s32 1, %s44
    $region7: #{tpu_custom_call.1} parent=1 // loop_footer_branch
      %43 = sbr.rel target = $region3
    $region8: #{tpu_custom_call.1} parent=1 // loop_exit
      _
    %1332 = vsyncpa [#allocation3], 1
    %s1333 = scalar_lea.sflag [#allocation3], 1
    %1334 = vsyncpa %s1333, 1
    %1335 = vsyncpa [#allocation6], 1
    %s1336 = scalar_lea.sflag [#allocation6], 1
    %1337 = vsyncpa %s1336, 1
    %1338 = vsyncpa [#allocation9], 1
    %1339 = vsyncpa [#allocation4], 1
    %s1340 = scalar_lea.sflag [#allocation4], 1
    %1341 = vsyncpa %s1340, 1
    %1342 = vsyncpa [#allocation13], 1
    %s1343 = scalar_lea.sflag [#allocation13], 1
    %1344 = vsyncpa %s1343, 1
    %1345 = vsyncpa [#allocation16], 1
    %s1346 = scalar_lea.sflag [#allocation16], 1
    %1347 = vsyncpa %s1346, 1

</llo_original>
